<compile_context>
chip_gen: v5e
topology: v5e:2x2
jax: 0.10.0
libtpu: 0.0.40
codegen_flags: <defaults>
</compile_context>

<pallas_src>
import functools

import jax
import jax.numpy as jnp
from jax.experimental import pallas as pl
from jax.experimental.pallas import tpu as pltpu


def _round_up(n, m):
    return (n + m - 1) // m * m


def _bigru_kernel(x_ref, wih_ref, whh_ref, bih_ref, bhh_ref, out_ref, gx_sc,
                  *, T, Bp, Hg):
    """One grid point == one GRU direction (0 = forward, 1 = backward)."""
    d = pl.program_id(0)

    # ---- Stage 1: input projection, hoisted out of the recurrence. ---------
    # (T*Bp, D) @ (D, 3*Hg) + b_ih  -> VMEM scratch (already includes b_ih).
    gx_sc[...] = (
        jnp.dot(x_ref[...], wih_ref[0], preferred_element_type=jnp.float32)
        + bih_ref[0]
    )

    # ---- Stage 2: time recurrence; only h @ W_hh^T is left per step. -------
    def step(t, h):
        # Forward direction walks t = 0..T-1, backward walks T-1..0.
        tt = jnp.where(d == 0, t, T - 1 - t)
        start = pl.multiple_of(tt * Bp, Bp)           # sublane-aligned slice
        gx_t = gx_sc[pl.ds(start, Bp), :]             # (Bp, 3Hg), has b_ih
        gh = (jnp.dot(h, whh_ref[0], preferred_element_type=jnp.float32)
              + bhh_ref[0])                           # (Bp, 3Hg), has b_hh
        # Gate slices are whole 128-lane vregs (Hg is a multiple of 128).
        r = jax.nn.sigmoid(gx_t[:, 0 * Hg:1 * Hg] + gh[:, 0 * Hg:1 * Hg])
        z = jax.nn.sigmoid(gx_t[:, 1 * Hg:2 * Hg] + gh[:, 1 * Hg:2 * Hg])
        n = jnp.tanh(gx_t[:, 2 * Hg:3 * Hg] + r * gh[:, 2 * Hg:3 * Hg])
        return (1.0 - z) * n + z * h

    h0 = jnp.zeros((Bp, Hg), jnp.float32)
    # T is small here; full unroll lets LLO schedule across time steps.
    h_fin = jax.lax.fori_loop(0, T, step, h0, unroll=True)
    out_ref[0] = h_fin


def _prep_direction(w_ih, w_hh, b_ih, b_hh, H, Hg, dtype=jnp.float32):
    """Transpose PyTorch-layout GRU weights and pad each gate block to Hg cols."""
    D = w_ih.shape[1]
    wih_t = jnp.zeros((D, 3 * Hg), dtype)
    whh_t = jnp.zeros((Hg, 3 * Hg), dtype)
    bih_t = jnp.zeros((1, 3 * Hg), dtype)
    bhh_t = jnp.zeros((1, 3 * Hg), dtype)
    for g in range(3):  # gate order r, z, n (PyTorch nn.GRU)
        wih_t = wih_t.at[:, g * Hg:g * Hg + H].set(w_ih[g * H:(g + 1) * H, :].T)
        whh_t = whh_t.at[:H, g * Hg:g * Hg + H].set(w_hh[g * H:(g + 1) * H, :].T)
        bih_t = bih_t.at[:, g * Hg:g * Hg + H].set(b_ih[g * H:(g + 1) * H][None, :])
        bhh_t = bhh_t.at[:, g * Hg:g * Hg + H].set(b_hh[g * H:(g + 1) * H][None, :])
    return wih_t, whh_t, bih_t, bhh_t


def bigru_forward(x, params):
    """x: (B, T, D) batch_first.  Returns hn_fwd + hn_bwd: (B, H)."""
    # TODO(synk): variable-length PackedSequence inputs are not handled; the kernel
    # assumes a dense (B, T, D) batch_first tensor.
    B, T, D = x.shape
    H = params["w_hh_f"].shape[1]
    assert params["w_ih_f"].shape == (3 * H, D)
    assert params["w_hh_f"].shape == (3 * H, H)

    Bp = _round_up(B, 8)        # sublane-aligned batch
    Hg = _round_up(H, 128)      # lane-aligned per-gate width

    # Batch-padded, time-major input, flattened for the single big x-projection.
    x_p = jnp.zeros((Bp, T, D), jnp.float32).at[:B].set(x.astype(jnp.float32))
    x_tm = jnp.transpose(x_p, (1, 0, 2)).reshape(T * Bp, D)

    wf = _prep_direction(params["w_ih_f"], params["w_hh_f"],
                         params["b_ih_f"], params["b_hh_f"], H, Hg)
    wb = _prep_direction(params["w_ih_b"], params["w_hh_b"],
                         params["b_ih_b"], params["b_hh_b"], H, Hg)
    wih = jnp.stack([wf[0], wb[0]])     # (2, D, 3Hg)
    whh = jnp.stack([wf[1], wb[1]])     # (2, Hg, 3Hg)
    bih = jnp.stack([wf[2], wb[2]])     # (2, 1, 3Hg)
    bhh = jnp.stack([wf[3], wb[3]])     # (2, 1, 3Hg)

    kernel = functools.partial(_bigru_kernel, T=T, Bp=Bp, Hg=Hg)

    grid_spec = pltpu.PrefetchScalarGridSpec(
        num_scalar_prefetch=0,
        grid=(2,),                                              # direction axis
        in_specs=[
            pl.BlockSpec((T * Bp, D), lambda d: (0, 0)),        # x (shared, resident)
            pl.BlockSpec((1, D, 3 * Hg), lambda d: (d, 0, 0)),  # W_ih^T per dir
            pl.BlockSpec((1, Hg, 3 * Hg), lambda d: (d, 0, 0)), # W_hh^T per dir
            pl.BlockSpec((1, 1, 3 * Hg), lambda d: (d, 0, 0)),  # b_ih per dir
            pl.BlockSpec((1, 1, 3 * Hg), lambda d: (d, 0, 0)),  # b_hh per dir
        ],
        out_specs=pl.BlockSpec((1, Bp, Hg), lambda d: (d, 0, 0)),
        scratch_shapes=[pltpu.VMEM((T * Bp, 3 * Hg), jnp.float32)],  # gates_x
    )

    out = pl.pallas_call(
        kernel,
        out_shape=jax.ShapeDtypeStruct((2, Bp, Hg), jnp.float32),
        grid_spec=grid_spec,
        compiler_params=pltpu.CompilerParams(
            # The two directions are independent recurrences -> parallel axis.
            dimension_semantics=("parallel",),
        ),
    )(x_tm, wih, whh, bih, bhh)

    # hn is (2, B, H); the module does squeeze + sum over the direction axis.
    return out[0, :B, :H] + out[1, :B, :H]


def bigru_reference(x, params):
    """Pure-JAX reference with PyTorch nn.GRU (bidirectional) semantics."""
    B, T, D = x.shape
    H = params["w_hh_f"].shape[1]

    def run(x_tm, w_ih, w_hh, b_ih, b_hh):
        def step(h, x_t):
            gi = x_t @ w_ih.T + b_ih
            gh = h @ w_hh.T + b_hh
            r = jax.nn.sigmoid(gi[:, 0 * H:1 * H] + gh[:, 0 * H:1 * H])
            z = jax.nn.sigmoid(gi[:, 1 * H:2 * H] + gh[:, 1 * H:2 * H])
            n = jnp.tanh(gi[:, 2 * H:3 * H] + r * gh[:, 2 * H:3 * H])
            return (1.0 - z) * n + z * h, None

        h0 = jnp.zeros((B, H), jnp.float32)
        h_fin, _ = jax.lax.scan(step, h0, x_tm)
        return h_fin

    x_tm = jnp.transpose(x, (1, 0, 2))
    h_f = run(x_tm, params["w_ih_f"], params["w_hh_f"],
              params["b_ih_f"], params["b_hh_f"])
    h_b = run(x_tm[::-1], params["w_ih_b"], params["w_hh_b"],
              params["b_ih_b"], params["b_hh_b"])
    return h_f + h_b  # == torch.sum(torch.squeeze(hn), 0)


if __name__ == "__main__":
    # Small shapes consistent with the module: batch=4, seq=8, input_dim=16, hidden=32.
    B, T, D, H = 4, 8, 16, 32

    key = jax.random.PRNGKey(0)
    keys = jax.random.split(key, 9)
    bound = 1.0 / jnp.sqrt(jnp.float32(H))

    def u(k, shape):
        return jax.random.uniform(k, shape, jnp.float32, -bound, bound)

    params = {
        "w_ih_f": u(keys[0], (3 * H, D)), "w_hh_f": u(keys[1], (3 * H, H)),
        "b_ih_f": u(keys[2], (3 * H,)),   "b_hh_f": u(keys[3], (3 * H,)),
        "w_ih_b": u(keys[4], (3 * H, D)), "w_hh_b": u(keys[5], (3 * H, H)),
        "b_ih_b": u(keys[6], (3 * H,)),   "b_hh_b": u(keys[7], (3 * H,)),
    }
    x = jax.random.normal(keys[8], (B, T, D), jnp.float32)  # packed_seqs (B, T, D)

    hn_kernel = jax.block_until_ready(bigru_forward(x, params))
    hn_ref = jax.block_until_ready(bigru_reference(x, params))

    assert hn_kernel.shape == (B, H)
    err = float(jnp.max(jnp.abs(hn_kernel - hn_ref)))
    assert jnp.allclose(hn_kernel, hn_ref, atol=1e-4, rtol=1e-4), err

    print("KERNEL_OK")
</pallas_src>

<mosaic_0001>
module attributes {stable_mosaic.version = 11 : i64} {
  func.func @_bigru_kernel(%arg0: i32, %arg1: memref<64x16xf32, #tpu.memory_space<vmem>>, %arg2: memref<1x16x384xf32, #tpu.memory_space<vmem>>, %arg3: memref<1x128x384xf32, #tpu.memory_space<vmem>>, %arg4: memref<1x1x384xf32, #tpu.memory_space<vmem>>, %arg5: memref<1x1x384xf32, #tpu.memory_space<vmem>>, %arg6: memref<1x8x128xf32, #tpu.memory_space<vmem>>, %arg7: memref<64x384xf32, #tpu.memory_space<vmem>>) attributes {dimension_semantics = [#tpu.dimension_semantics<parallel>], iteration_bounds = array<i64: 2>, scalar_prefetch = 0 : i64, scratch_operands = 1 : i64, tpu.core_type = #tpu.core_type<tc>, window_params = [{pipeline_mode = #tpu.pipeline_mode<synchronous>, transform_indices = @transform_0, window_bounds = array<i64: 64, 16>}, {transform_indices = @transform_1, window_bounds = array<i64: 1, 16, 384>}, {transform_indices = @transform_2, window_bounds = array<i64: 1, 128, 384>}, {transform_indices = @transform_3, window_bounds = array<i64: 1, 1, 384>}, {transform_indices = @transform_4, window_bounds = array<i64: 1, 1, 384>}, {transform_indices = @transform_5, window_bounds = array<i64: 1, 8, 128>}]} {
    %c0 = arith.constant 0 : index
    %c0_0 = arith.constant 0 : index
    %0 = vector.load %arg1[%c0, %c0_0] : memref<64x16xf32, #tpu.memory_space<vmem>>, vector<64x16xf32>
    %c0_1 = arith.constant 0 : index
    %c0_2 = arith.constant 0 : index
    %c0_3 = arith.constant 0 : index
    %1 = vector.load %arg2[%c0_1, %c0_2, %c0_3] : memref<1x16x384xf32, #tpu.memory_space<vmem>>, vector<1x16x384xf32>
    %2 = vector.shape_cast %1 : vector<1x16x384xf32> to vector<16x384xf32>
    %cst = arith.constant dense<0.000000e+00> : vector<64x384xf32>
    %3 = tpu.matmul %0, %2, %cst {dimension_numbers = #tpu.dot_dimension_numbers<[1], [0], [0], [1], [0, 0, 1, 1], [], []>} : vector<64x16xf32>, vector<16x384xf32>, vector<64x384xf32> -> vector<64x384xf32>
    %c0_4 = arith.constant 0 : index
    %c0_5 = arith.constant 0 : index
    %c0_6 = arith.constant 0 : index
    %4 = vector.load %arg4[%c0_4, %c0_5, %c0_6] : memref<1x1x384xf32, #tpu.memory_space<vmem>>, vector<1x1x384xf32>
    %5 = vector.shape_cast %4 : vector<1x1x384xf32> to vector<1x384xf32>
    %6 = vector.broadcast %5 : vector<1x384xf32> to vector<64x384xf32>
    %7 = arith.addf %3, %6 : vector<64x384xf32>
    %c0_7 = arith.constant 0 : index
    %c0_8 = arith.constant 0 : index
    %8 = vector.load %arg7[%c0_7, %c0_8] : memref<64x384xf32, #tpu.memory_space<vmem>>, vector<64x384xf32>
    tpu.vector_store %arg7[%c0_7, %c0_8], %7 {strides = array<i32>} : memref<64x384xf32, #tpu.memory_space<vmem>>, vector<64x384xf32>,
    %cst_9 = arith.constant 0.000000e+00 : f32
    %9 = vector.broadcast %cst_9 : f32 to vector<8x128xf32>
    %c0_i32 = arith.constant 0 : i32
    %c0_i32_10 = arith.constant 0 : i32
    %10 = arith.cmpi eq, %arg0, %c0_i32_10 : i32
    %c7_i32 = arith.constant 7 : i32
    %11 = arith.subi %c7_i32, %c0_i32 : i32
    %12 = arith.select %10, %c0_i32, %11 : i32
    %c8_i32 = arith.constant 8 : i32
    %13 = arith.muli %12, %c8_i32 : i32
    %14 = tpu.assume_multiple %13, 8 : i32
    %15 = arith.index_cast %14 : i32 to index
    %c0_11 = arith.constant 0 : index
    %16 = vector.load %arg7[%15, %c0_11] : memref<64x384xf32, #tpu.memory_space<vmem>>, vector<8x384xf32>
    %c0_12 = arith.constant 0 : index
    %c0_13 = arith.constant 0 : index
    %c0_14 = arith.constant 0 : index
    %17 = vector.load %arg3[%c0_12, %c0_13, %c0_14] : memref<1x128x384xf32, #tpu.memory_space<vmem>>, vector<1x128x384xf32>
    %18 = vector.shape_cast %17 : vector<1x128x384xf32> to vector<128x384xf32>
    %cst_15 = arith.constant dense<0.000000e+00> : vector<8x384xf32>
    %19 = tpu.matmul %9, %18, %cst_15 {dimension_numbers = #tpu.dot_dimension_numbers<[1], [0], [0], [1], [0, 0, 1, 1], [], []>} : vector<8x128xf32>, vector<128x384xf32>, vector<8x384xf32> -> vector<8x384xf32>
    %c0_16 = arith.constant 0 : index
    %c0_17 = arith.constant 0 : index
    %c0_18 = arith.constant 0 : index
    %20 = vector.load %arg5[%c0_16, %c0_17, %c0_18] : memref<1x1x384xf32, #tpu.memory_space<vmem>>, vector<1x1x384xf32>
    %21 = vector.shape_cast %20 : vector<1x1x384xf32> to vector<1x384xf32>
    %22 = vector.broadcast %21 : vector<1x384xf32> to vector<8x384xf32>
    %23 = arith.addf %19, %22 : vector<8x384xf32>
    %24 = vector.extract_strided_slice %16 {offsets = [0, 0], sizes = [8, 128], strides = [1, 1]} : vector<8x384xf32> to vector<8x128xf32>
    %25 = vector.extract_strided_slice %23 {offsets = [0, 0], sizes = [8, 128], strides = [1, 1]} : vector<8x384xf32> to vector<8x128xf32>
    %26 = arith.addf %24, %25 : vector<8x128xf32>
    %27 = arith.negf %26 : vector<8x128xf32>
    %28 = math.exp %27 : vector<8x128xf32>
    %cst_19 = arith.constant 1.000000e+00 : f32
    %29 = vector.broadcast %cst_19 : f32 to vector<8x128xf32>
    %30 = arith.addf %29, %28 : vector<8x128xf32>
    %31 = arith.divf %29, %30 : vector<8x128xf32>
    %32 = vector.extract_strided_slice %16 {offsets = [0, 128], sizes = [8, 128], strides = [1, 1]} : vector<8x384xf32> to vector<8x128xf32>
    %33 = vector.extract_strided_slice %23 {offsets = [0, 128], sizes = [8, 128], strides = [1, 1]} : vector<8x384xf32> to vector<8x128xf32>
    %34 = arith.addf %32, %33 : vector<8x128xf32>
    %35 = arith.negf %34 : vector<8x128xf32>
    %36 = math.exp %35 : vector<8x128xf32>
    %cst_20 = arith.constant 1.000000e+00 : f32
    %37 = vector.broadcast %cst_20 : f32 to vector<8x128xf32>
    %38 = arith.addf %37, %36 : vector<8x128xf32>
    %39 = arith.divf %37, %38 : vector<8x128xf32>
    %40 = vector.extract_strided_slice %16 {offsets = [0, 256], sizes = [8, 128], strides = [1, 1]} : vector<8x384xf32> to vector<8x128xf32>
    %41 = vector.extract_strided_slice %23 {offsets = [0, 256], sizes = [8, 128], strides = [1, 1]} : vector<8x384xf32> to vector<8x128xf32>
    %42 = arith.mulf %31, %41 : vector<8x128xf32>
    %43 = arith.addf %40, %42 : vector<8x128xf32>
    %44 = math.tanh %43 : vector<8x128xf32>
    %cst_21 = arith.constant 1.000000e+00 : f32
    %45 = vector.broadcast %cst_21 : f32 to vector<8x128xf32>
    %46 = arith.subf %45, %39 : vector<8x128xf32>
    %47 = arith.mulf %46, %44 : vector<8x128xf32>
    %48 = arith.mulf %39, %9 : vector<8x128xf32>
    %49 = arith.addf %47, %48 : vector<8x128xf32>
    %c1_i32 = arith.constant 1 : i32
    %c0_i32_22 = arith.constant 0 : i32
    %50 = arith.cmpi eq, %arg0, %c0_i32_22 : i32
    %c7_i32_23 = arith.constant 7 : i32
    %51 = arith.subi %c7_i32_23, %c1_i32 : i32
    %52 = arith.select %50, %c1_i32, %51 : i32
    %c8_i32_24 = arith.constant 8 : i32
    %53 = arith.muli %52, %c8_i32_24 : i32
    %54 = tpu.assume_multiple %53, 8 : i32
    %55 = arith.index_cast %54 : i32 to index
    %c0_25 = arith.constant 0 : index
    %56 = vector.load %arg7[%55, %c0_25] : memref<64x384xf32, #tpu.memory_space<vmem>>, vector<8x384xf32>
    %c0_26 = arith.constant 0 : index
    %c0_27 = arith.constant 0 : index
    %c0_28 = arith.constant 0 : index
    %57 = vector.load %arg3[%c0_26, %c0_27, %c0_28] : memref<1x128x384xf32, #tpu.memory_space<vmem>>, vector<1x128x384xf32>
    %58 = vector.shape_cast %57 : vector<1x128x384xf32> to vector<128x384xf32>
    %cst_29 = arith.constant dense<0.000000e+00> : vector<8x384xf32>
    %59 = tpu.matmul %49, %58, %cst_29 {dimension_numbers = #tpu.dot_dimension_numbers<[1], [0], [0], [1], [0, 0, 1, 1], [], []>} : vector<8x128xf32>, vector<128x384xf32>, vector<8x384xf32> -> vector<8x384xf32>
    %c0_30 = arith.constant 0 : index
    %c0_31 = arith.constant 0 : index
    %c0_32 = arith.constant 0 : index
    %60 = vector.load %arg5[%c0_30, %c0_31, %c0_32] : memref<1x1x384xf32, #tpu.memory_space<vmem>>, vector<1x1x384xf32>
    %61 = vector.shape_cast %60 : vector<1x1x384xf32> to vector<1x384xf32>
    %62 = vector.broadcast %61 : vector<1x384xf32> to vector<8x384xf32>
    %63 = arith.addf %59, %62 : vector<8x384xf32>
    %64 = vector.extract_strided_slice %56 {offsets = [0, 0], sizes = [8, 128], strides = [1, 1]} : vector<8x384xf32> to vector<8x128xf32>
    %65 = vector.extract_strided_slice %63 {offsets = [0, 0], sizes = [8, 128], strides = [1, 1]} : vector<8x384xf32> to vector<8x128xf32>
    %66 = arith.addf %64, %65 : vector<8x128xf32>
    %67 = arith.negf %66 : vector<8x128xf32>
    %68 = math.exp %67 : vector<8x128xf32>
    %cst_33 = arith.constant 1.000000e+00 : f32
    %69 = vector.broadcast %cst_33 : f32 to vector<8x128xf32>
    %70 = arith.addf %69, %68 : vector<8x128xf32>
    %71 = arith.divf %69, %70 : vector<8x128xf32>
    %72 = vector.extract_strided_slice %56 {offsets = [0, 128], sizes = [8, 128], strides = [1, 1]} : vector<8x384xf32> to vector<8x128xf32>
    %73 = vector.extract_strided_slice %63 {offsets = [0, 128], sizes = [8, 128], strides = [1, 1]} : vector<8x384xf32> to vector<8x128xf32>
    %74 = arith.addf %72, %73 : vector<8x128xf32>
    %75 = arith.negf %74 : vector<8x128xf32>
    %76 = math.exp %75 : vector<8x128xf32>
    %cst_34 = arith.constant 1.000000e+00 : f32
    %77 = vector.broadcast %cst_34 : f32 to vector<8x128xf32>
    %78 = arith.addf %77, %76 : vector<8x128xf32>
    %79 = arith.divf %77, %78 : vector<8x128xf32>
    %80 = vector.extract_strided_slice %56 {offsets = [0, 256], sizes = [8, 128], strides = [1, 1]} : vector<8x384xf32> to vector<8x128xf32>
    %81 = vector.extract_strided_slice %63 {offsets = [0, 256], sizes = [8, 128], strides = [1, 1]} : vector<8x384xf32> to vector<8x128xf32>
    %82 = arith.mulf %71, %81 : vector<8x128xf32>
    %83 = arith.addf %80, %82 : vector<8x128xf32>
    %84 = math.tanh %83 : vector<8x128xf32>
    %cst_35 = arith.constant 1.000000e+00 : f32
    %85 = vector.broadcast %cst_35 : f32 to vector<8x128xf32>
    %86 = arith.subf %85, %79 : vector<8x128xf32>
    %87 = arith.mulf %86, %84 : vector<8x128xf32>
    %88 = arith.mulf %79, %49 : vector<8x128xf32>
    %89 = arith.addf %87, %88 : vector<8x128xf32>
    %c2_i32 = arith.constant 2 : i32
    %c0_i32_36 = arith.constant 0 : i32
    %90 = arith.cmpi eq, %arg0, %c0_i32_36 : i32
    %c7_i32_37 = arith.constant 7 : i32
    %91 = arith.subi %c7_i32_37, %c2_i32 : i32
    %92 = arith.select %90, %c2_i32, %91 : i32
    %c8_i32_38 = arith.constant 8 : i32
    %93 = arith.muli %92, %c8_i32_38 : i32
    %94 = tpu.assume_multiple %93, 8 : i32
    %95 = arith.index_cast %94 : i32 to index
    %c0_39 = arith.constant 0 : index
    %96 = vector.load %arg7[%95, %c0_39] : memref<64x384xf32, #tpu.memory_space<vmem>>, vector<8x384xf32>
    %c0_40 = arith.constant 0 : index
    %c0_41 = arith.constant 0 : index
    %c0_42 = arith.constant 0 : index
    %97 = vector.load %arg3[%c0_40, %c0_41, %c0_42] : memref<1x128x384xf32, #tpu.memory_space<vmem>>, vector<1x128x384xf32>
    %98 = vector.shape_cast %97 : vector<1x128x384xf32> to vector<128x384xf32>
    %cst_43 = arith.constant dense<0.000000e+00> : vector<8x384xf32>
    %99 = tpu.matmul %89, %98, %cst_43 {dimension_numbers = #tpu.dot_dimension_numbers<[1], [0], [0], [1], [0, 0, 1, 1], [], []>} : vector<8x128xf32>, vector<128x384xf32>, vector<8x384xf32> -> vector<8x384xf32>
    %c0_44 = arith.constant 0 : index
    %c0_45 = arith.constant 0 : index
    %c0_46 = arith.constant 0 : index
    %100 = vector.load %arg5[%c0_44, %c0_45, %c0_46] : memref<1x1x384xf32, #tpu.memory_space<vmem>>, vector<1x1x384xf32>
    %101 = vector.shape_cast %100 : vector<1x1x384xf32> to vector<1x384xf32>
    %102 = vector.broadcast %101 : vector<1x384xf32> to vector<8x384xf32>
    %103 = arith.addf %99, %102 : vector<8x384xf32>
    %104 = vector.extract_strided_slice %96 {offsets = [0, 0], sizes = [8, 128], strides = [1, 1]} : vector<8x384xf32> to vector<8x128xf32>
    %105 = vector.extract_strided_slice %103 {offsets = [0, 0], sizes = [8, 128], strides = [1, 1]} : vector<8x384xf32> to vector<8x128xf32>
    %106 = arith.addf %104, %105 : vector<8x128xf32>
    %107 = arith.negf %106 : vector<8x128xf32>
    %108 = math.exp %107 : vector<8x128xf32>
    %cst_47 = arith.constant 1.000000e+00 : f32
    %109 = vector.broadcast %cst_47 : f32 to vector<8x128xf32>
    %110 = arith.addf %109, %108 : vector<8x128xf32>
    %111 = arith.divf %109, %110 : vector<8x128xf32>
    %112 = vector.extract_strided_slice %96 {offsets = [0, 128], sizes = [8, 128], strides = [1, 1]} : vector<8x384xf32> to vector<8x128xf32>
    %113 = vector.extract_strided_slice %103 {offsets = [0, 128], sizes = [8, 128], strides = [1, 1]} : vector<8x384xf32> to vector<8x128xf32>
    %114 = arith.addf %112, %113 : vector<8x128xf32>
    %115 = arith.negf %114 : vector<8x128xf32>
    %116 = math.exp %115 : vector<8x128xf32>
    %cst_48 = arith.constant 1.000000e+00 : f32
    %117 = vector.broadcast %cst_48 : f32 to vector<8x128xf32>
    %118 = arith.addf %117, %116 : vector<8x128xf32>
    %119 = arith.divf %117, %118 : vector<8x128xf32>
    %120 = vector.extract_strided_slice %96 {offsets = [0, 256], sizes = [8, 128], strides = [1, 1]} : vector<8x384xf32> to vector<8x128xf32>
    %121 = vector.extract_strided_slice %103 {offsets = [0, 256], sizes = [8, 128], strides = [1, 1]} : vector<8x384xf32> to vector<8x128xf32>
    %122 = arith.mulf %111, %121 : vector<8x128xf32>
    %123 = arith.addf %120, %122 : vector<8x128xf32>
    %124 = math.tanh %123 : vector<8x128xf32>
    %cst_49 = arith.constant 1.000000e+00 : f32
    %125 = vector.broadcast %cst_49 : f32 to vector<8x128xf32>
    %126 = arith.subf %125, %119 : vector<8x128xf32>
    %127 = arith.mulf %126, %124 : vector<8x128xf32>
    %128 = arith.mulf %119, %89 : vector<8x128xf32>
    %129 = arith.addf %127, %128 : vector<8x128xf32>
    %c3_i32 = arith.constant 3 : i32
    %c0_i32_50 = arith.constant 0 : i32
    %130 = arith.cmpi eq, %arg0, %c0_i32_50 : i32
    %c7_i32_51 = arith.constant 7 : i32
    %131 = arith.subi %c7_i32_51, %c3_i32 : i32
    %132 = arith.select %130, %c3_i32, %131 : i32
    %c8_i32_52 = arith.constant 8 : i32
    %133 = arith.muli %132, %c8_i32_52 : i32
    %134 = tpu.assume_multiple %133, 8 : i32
    %135 = arith.index_cast %134 : i32 to index
    %c0_53 = arith.constant 0 : index
    %136 = vector.load %arg7[%135, %c0_53] : memref<64x384xf32, #tpu.memory_space<vmem>>, vector<8x384xf32>
    %c0_54 = arith.constant 0 : index
    %c0_55 = arith.constant 0 : index
    %c0_56 = arith.constant 0 : index
    %137 = vector.load %arg3[%c0_54, %c0_55, %c0_56] : memref<1x128x384xf32, #tpu.memory_space<vmem>>, vector<1x128x384xf32>
    %138 = vector.shape_cast %137 : vector<1x128x384xf32> to vector<128x384xf32>
    %cst_57 = arith.constant dense<0.000000e+00> : vector<8x384xf32>
    %139 = tpu.matmul %129, %138, %cst_57 {dimension_numbers = #tpu.dot_dimension_numbers<[1], [0], [0], [1], [0, 0, 1, 1], [], []>} : vector<8x128xf32>, vector<128x384xf32>, vector<8x384xf32> -> vector<8x384xf32>
    %c0_58 = arith.constant 0 : index
    %c0_59 = arith.constant 0 : index
    %c0_60 = arith.constant 0 : index
    %140 = vector.load %arg5[%c0_58, %c0_59, %c0_60] : memref<1x1x384xf32, #tpu.memory_space<vmem>>, vector<1x1x384xf32>
    %141 = vector.shape_cast %140 : vector<1x1x384xf32> to vector<1x384xf32>
    %142 = vector.broadcast %141 : vector<1x384xf32> to vector<8x384xf32>
    %143 = arith.addf %139, %142 : vector<8x384xf32>
    %144 = vector.extract_strided_slice %136 {offsets = [0, 0], sizes = [8, 128], strides = [1, 1]} : vector<8x384xf32> to vector<8x128xf32>
    %145 = vector.extract_strided_slice %143 {offsets = [0, 0], sizes = [8, 128], strides = [1, 1]} : vector<8x384xf32> to vector<8x128xf32>
    %146 = arith.addf %144, %145 : vector<8x128xf32>
    %147 = arith.negf %146 : vector<8x128xf32>
    %148 = math.exp %147 : vector<8x128xf32>
    %cst_61 = arith.constant 1.000000e+00 : f32
    %149 = vector.broadcast %cst_61 : f32 to vector<8x128xf32>
    %150 = arith.addf %149, %148 : vector<8x128xf32>
    %151 = arith.divf %149, %150 : vector<8x128xf32>
    %152 = vector.extract_strided_slice %136 {offsets = [0, 128], sizes = [8, 128], strides = [1, 1]} : vector<8x384xf32> to vector<8x128xf32>
    %153 = vector.extract_strided_slice %143 {offsets = [0, 128], sizes = [8, 128], strides = [1, 1]} : vector<8x384xf32> to vector<8x128xf32>
    %154 = arith.addf %152, %153 : vector<8x128xf32>
    %155 = arith.negf %154 : vector<8x128xf32>
    %156 = math.exp %155 : vector<8x128xf32>
    %cst_62 = arith.constant 1.000000e+00 : f32
    %157 = vector.broadcast %cst_62 : f32 to vector<8x128xf32>
    %158 = arith.addf %157, %156 : vector<8x128xf32>
    %159 = arith.divf %157, %158 : vector<8x128xf32>
    %160 = vector.extract_strided_slice %136 {offsets = [0, 256], sizes = [8, 128], strides = [1, 1]} : vector<8x384xf32> to vector<8x128xf32>
    %161 = vector.extract_strided_slice %143 {offsets = [0, 256], sizes = [8, 128], strides = [1, 1]} : vector<8x384xf32> to vector<8x128xf32>
    %162 = arith.mulf %151, %161 : vector<8x128xf32>
    %163 = arith.addf %160, %162 : vector<8x128xf32>
    %164 = math.tanh %163 : vector<8x128xf32>
    %cst_63 = arith.constant 1.000000e+00 : f32
    %165 = vector.broadcast %cst_63 : f32 to vector<8x128xf32>
    %166 = arith.subf %165, %159 : vector<8x128xf32>
    %167 = arith.mulf %166, %164 : vector<8x128xf32>
    %168 = arith.mulf %159, %129 : vector<8x128xf32>
    %169 = arith.addf %167, %168 : vector<8x128xf32>
    %c4_i32 = arith.constant 4 : i32
    %c0_i32_64 = arith.constant 0 : i32
    %170 = arith.cmpi eq, %arg0, %c0_i32_64 : i32
    %c7_i32_65 = arith.constant 7 : i32
    %171 = arith.subi %c7_i32_65, %c4_i32 : i32
    %172 = arith.select %170, %c4_i32, %171 : i32
    %c8_i32_66 = arith.constant 8 : i32
    %173 = arith.muli %172, %c8_i32_66 : i32
    %174 = tpu.assume_multiple %173, 8 : i32
    %175 = arith.index_cast %174 : i32 to index
    %c0_67 = arith.constant 0 : index
    %176 = vector.load %arg7[%175, %c0_67] : memref<64x384xf32, #tpu.memory_space<vmem>>, vector<8x384xf32>
    %c0_68 = arith.constant 0 : index
    %c0_69 = arith.constant 0 : index
    %c0_70 = arith.constant 0 : index
    %177 = vector.load %arg3[%c0_68, %c0_69, %c0_70] : memref<1x128x384xf32, #tpu.memory_space<vmem>>, vector<1x128x384xf32>
    %178 = vector.shape_cast %177 : vector<1x128x384xf32> to vector<128x384xf32>
    %cst_71 = arith.constant dense<0.000000e+00> : vector<8x384xf32>
    %179 = tpu.matmul %169, %178, %cst_71 {dimension_numbers = #tpu.dot_dimension_numbers<[1], [0], [0], [1], [0, 0, 1, 1], [], []>} : vector<8x128xf32>, vector<128x384xf32>, vector<8x384xf32> -> vector<8x384xf32>
    %c0_72 = arith.constant 0 : index
    %c0_73 = arith.constant 0 : index
    %c0_74 = arith.constant 0 : index
    %180 = vector.load %arg5[%c0_72, %c0_73, %c0_74] : memref<1x1x384xf32, #tpu.memory_space<vmem>>, vector<1x1x384xf32>
    %181 = vector.shape_cast %180 : vector<1x1x384xf32> to vector<1x384xf32>
    %182 = vector.broadcast %181 : vector<1x384xf32> to vector<8x384xf32>
    %183 = arith.addf %179, %182 : vector<8x384xf32>
    %184 = vector.extract_strided_slice %176 {offsets = [0, 0], sizes = [8, 128], strides = [1, 1]} : vector<8x384xf32> to vector<8x128xf32>
    %185 = vector.extract_strided_slice %183 {offsets = [0, 0], sizes = [8, 128], strides = [1, 1]} : vector<8x384xf32> to vector<8x128xf32>
    %186 = arith.addf %184, %185 : vector<8x128xf32>
    %187 = arith.negf %186 : vector<8x128xf32>
    %188 = math.exp %187 : vector<8x128xf32>
    %cst_75 = arith.constant 1.000000e+00 : f32
    %189 = vector.broadcast %cst_75 : f32 to vector<8x128xf32>
    %190 = arith.addf %189, %188 : vector<8x128xf32>
    %191 = arith.divf %189, %190 : vector<8x128xf32>
    %192 = vector.extract_strided_slice %176 {offsets = [0, 128], sizes = [8, 128], strides = [1, 1]} : vector<8x384xf32> to vector<8x128xf32>
    %193 = vector.extract_strided_slice %183 {offsets = [0, 128], sizes = [8, 128], strides = [1, 1]} : vector<8x384xf32> to vector<8x128xf32>
    %194 = arith.addf %192, %193 : vector<8x128xf32>
    %195 = arith.negf %194 : vector<8x128xf32>
    %196 = math.exp %195 : vector<8x128xf32>
    %cst_76 = arith.constant 1.000000e+00 : f32
    %197 = vector.broadcast %cst_76 : f32 to vector<8x128xf32>
    %198 = arith.addf %197, %196 : vector<8x128xf32>
    %199 = arith.divf %197, %198 : vector<8x128xf32>
    %200 = vector.extract_strided_slice %176 {offsets = [0, 256], sizes = [8, 128], strides = [1, 1]} : vector<8x384xf32> to vector<8x128xf32>
    %201 = vector.extract_strided_slice %183 {offsets = [0, 256], sizes = [8, 128], strides = [1, 1]} : vector<8x384xf32> to vector<8x128xf32>
    %202 = arith.mulf %191, %201 : vector<8x128xf32>
    %203 = arith.addf %200, %202 : vector<8x128xf32>
    %204 = math.tanh %203 : vector<8x128xf32>
    %cst_77 = arith.constant 1.000000e+00 : f32
    %205 = vector.broadcast %cst_77 : f32 to vector<8x128xf32>
    %206 = arith.subf %205, %199 : vector<8x128xf32>
    %207 = arith.mulf %206, %204 : vector<8x128xf32>
    %208 = arith.mulf %199, %169 : vector<8x128xf32>
    %209 = arith.addf %207, %208 : vector<8x128xf32>
    %c5_i32 = arith.constant 5 : i32
    %c0_i32_78 = arith.constant 0 : i32
    %210 = arith.cmpi eq, %arg0, %c0_i32_78 : i32
    %c7_i32_79 = arith.constant 7 : i32
    %211 = arith.subi %c7_i32_79, %c5_i32 : i32
    %212 = arith.select %210, %c5_i32, %211 : i32
    %c8_i32_80 = arith.constant 8 : i32
    %213 = arith.muli %212, %c8_i32_80 : i32
    %214 = tpu.assume_multiple %213, 8 : i32
    %215 = arith.index_cast %214 : i32 to index
    %c0_81 = arith.constant 0 : index
    %216 = vector.load %arg7[%215, %c0_81] : memref<64x384xf32, #tpu.memory_space<vmem>>, vector<8x384xf32>
    %c0_82 = arith.constant 0 : index
    %c0_83 = arith.constant 0 : index
    %c0_84 = arith.constant 0 : index
    %217 = vector.load %arg3[%c0_82, %c0_83, %c0_84] : memref<1x128x384xf32, #tpu.memory_space<vmem>>, vector<1x128x384xf32>
    %218 = vector.shape_cast %217 : vector<1x128x384xf32> to vector<128x384xf32>
    %cst_85 = arith.constant dense<0.000000e+00> : vector<8x384xf32>
    %219 = tpu.matmul %209, %218, %cst_85 {dimension_numbers = #tpu.dot_dimension_numbers<[1], [0], [0], [1], [0, 0, 1, 1], [], []>} : vector<8x128xf32>, vector<128x384xf32>, vector<8x384xf32> -> vector<8x384xf32>
    %c0_86 = arith.constant 0 : index
    %c0_87 = arith.constant 0 : index
    %c0_88 = arith.constant 0 : index
    %220 = vector.load %arg5[%c0_86, %c0_87, %c0_88] : memref<1x1x384xf32, #tpu.memory_space<vmem>>, vector<1x1x384xf32>
    %221 = vector.shape_cast %220 : vector<1x1x384xf32> to vector<1x384xf32>
    %222 = vector.broadcast %221 : vector<1x384xf32> to vector<8x384xf32>
    %223 = arith.addf %219, %222 : vector<8x384xf32>
    %224 = vector.extract_strided_slice %216 {offsets = [0, 0], sizes = [8, 128], strides = [1, 1]} : vector<8x384xf32> to vector<8x128xf32>
    %225 = vector.extract_strided_slice %223 {offsets = [0, 0], sizes = [8, 128], strides = [1, 1]} : vector<8x384xf32> to vector<8x128xf32>
    %226 = arith.addf %224, %225 : vector<8x128xf32>
    %227 = arith.negf %226 : vector<8x128xf32>
    %228 = math.exp %227 : vector<8x128xf32>
    %cst_89 = arith.constant 1.000000e+00 : f32
    %229 = vector.broadcast %cst_89 : f32 to vector<8x128xf32>
    %230 = arith.addf %229, %228 : vector<8x128xf32>
    %231 = arith.divf %229, %230 : vector<8x128xf32>
    %232 = vector.extract_strided_slice %216 {offsets = [0, 128], sizes = [8, 128], strides = [1, 1]} : vector<8x384xf32> to vector<8x128xf32>
    %233 = vector.extract_strided_slice %223 {offsets = [0, 128], sizes = [8, 128], strides = [1, 1]} : vector<8x384xf32> to vector<8x128xf32>
    %234 = arith.addf %232, %233 : vector<8x128xf32>
    %235 = arith.negf %234 : vector<8x128xf32>
    %236 = math.exp %235 : vector<8x128xf32>
    %cst_90 = arith.constant 1.000000e+00 : f32
    %237 = vector.broadcast %cst_90 : f32 to vector<8x128xf32>
    %238 = arith.addf %237, %236 : vector<8x128xf32>
    %239 = arith.divf %237, %238 : vector<8x128xf32>
    %240 = vector.extract_strided_slice %216 {offsets = [0, 256], sizes = [8, 128], strides = [1, 1]} : vector<8x384xf32> to vector<8x128xf32>
    %241 = vector.extract_strided_slice %223 {offsets = [0, 256], sizes = [8, 128], strides = [1, 1]} : vector<8x384xf32> to vector<8x128xf32>
    %242 = arith.mulf %231, %241 : vector<8x128xf32>
    %243 = arith.addf %240, %242 : vector<8x128xf32>
    %244 = math.tanh %243 : vector<8x128xf32>
    %cst_91 = arith.constant 1.000000e+00 : f32
    %245 = vector.broadcast %cst_91 : f32 to vector<8x128xf32>
    %246 = arith.subf %245, %239 : vector<8x128xf32>
    %247 = arith.mulf %246, %244 : vector<8x128xf32>
    %248 = arith.mulf %239, %209 : vector<8x128xf32>
    %249 = arith.addf %247, %248 : vector<8x128xf32>
    %c6_i32 = arith.constant 6 : i32
    %c0_i32_92 = arith.constant 0 : i32
    %250 = arith.cmpi eq, %arg0, %c0_i32_92 : i32
    %c7_i32_93 = arith.constant 7 : i32
    %251 = arith.subi %c7_i32_93, %c6_i32 : i32
    %252 = arith.select %250, %c6_i32, %251 : i32
    %c8_i32_94 = arith.constant 8 : i32
    %253 = arith.muli %252, %c8_i32_94 : i32
    %254 = tpu.assume_multiple %253, 8 : i32
    %255 = arith.index_cast %254 : i32 to index
    %c0_95 = arith.constant 0 : index
    %256 = vector.load %arg7[%255, %c0_95] : memref<64x384xf32, #tpu.memory_space<vmem>>, vector<8x384xf32>
    %c0_96 = arith.constant 0 : index
    %c0_97 = arith.constant 0 : index
    %c0_98 = arith.constant 0 : index
    %257 = vector.load %arg3[%c0_96, %c0_97, %c0_98] : memref<1x128x384xf32, #tpu.memory_space<vmem>>, vector<1x128x384xf32>
    %258 = vector.shape_cast %257 : vector<1x128x384xf32> to vector<128x384xf32>
    %cst_99 = arith.constant dense<0.000000e+00> : vector<8x384xf32>
    %259 = tpu.matmul %249, %258, %cst_99 {dimension_numbers = #tpu.dot_dimension_numbers<[1], [0], [0], [1], [0, 0, 1, 1], [], []>} : vector<8x128xf32>, vector<128x384xf32>, vector<8x384xf32> -> vector<8x384xf32>
    %c0_100 = arith.constant 0 : index
    %c0_101 = arith.constant 0 : index
    %c0_102 = arith.constant 0 : index
    %260 = vector.load %arg5[%c0_100, %c0_101, %c0_102] : memref<1x1x384xf32, #tpu.memory_space<vmem>>, vector<1x1x384xf32>
    %261 = vector.shape_cast %260 : vector<1x1x384xf32> to vector<1x384xf32>
    %262 = vector.broadcast %261 : vector<1x384xf32> to vector<8x384xf32>
    %263 = arith.addf %259, %262 : vector<8x384xf32>
    %264 = vector.extract_strided_slice %256 {offsets = [0, 0], sizes = [8, 128], strides = [1, 1]} : vector<8x384xf32> to vector<8x128xf32>
    %265 = vector.extract_strided_slice %263 {offsets = [0, 0], sizes = [8, 128], strides = [1, 1]} : vector<8x384xf32> to vector<8x128xf32>
    %266 = arith.addf %264, %265 : vector<8x128xf32>
    %267 = arith.negf %266 : vector<8x128xf32>
    %268 = math.exp %267 : vector<8x128xf32>
    %cst_103 = arith.constant 1.000000e+00 : f32
    %269 = vector.broadcast %cst_103 : f32 to vector<8x128xf32>
    %270 = arith.addf %269, %268 : vector<8x128xf32>
    %271 = arith.divf %269, %270 : vector<8x128xf32>
    %272 = vector.extract_strided_slice %256 {offsets = [0, 128], sizes = [8, 128], strides = [1, 1]} : vector<8x384xf32> to vector<8x128xf32>
    %273 = vector.extract_strided_slice %263 {offsets = [0, 128], sizes = [8, 128], strides = [1, 1]} : vector<8x384xf32> to vector<8x128xf32>
    %274 = arith.addf %272, %273 : vector<8x128xf32>
    %275 = arith.negf %274 : vector<8x128xf32>
    %276 = math.exp %275 : vector<8x128xf32>
    %cst_104 = arith.constant 1.000000e+00 : f32
    %277 = vector.broadcast %cst_104 : f32 to vector<8x128xf32>
    %278 = arith.addf %277, %276 : vector<8x128xf32>
    %279 = arith.divf %277, %278 : vector<8x128xf32>
    %280 = vector.extract_strided_slice %256 {offsets = [0, 256], sizes = [8, 128], strides = [1, 1]} : vector<8x384xf32> to vector<8x128xf32>
    %281 = vector.extract_strided_slice %263 {offsets = [0, 256], sizes = [8, 128], strides = [1, 1]} : vector<8x384xf32> to vector<8x128xf32>
    %282 = arith.mulf %271, %281 : vector<8x128xf32>
    %283 = arith.addf %280, %282 : vector<8x128xf32>
    %284 = math.tanh %283 : vector<8x128xf32>
    %cst_105 = arith.constant 1.000000e+00 : f32
    %285 = vector.broadcast %cst_105 : f32 to vector<8x128xf32>
    %286 = arith.subf %285, %279 : vector<8x128xf32>
    %287 = arith.mulf %286, %284 : vector<8x128xf32>
    %288 = arith.mulf %279, %249 : vector<8x128xf32>
    %289 = arith.addf %287, %288 : vector<8x128xf32>
    %c7_i32_106 = arith.constant 7 : i32
    %c0_i32_107 = arith.constant 0 : i32
    %290 = arith.cmpi eq, %arg0, %c0_i32_107 : i32
    %c7_i32_108 = arith.constant 7 : i32
    %291 = arith.subi %c7_i32_108, %c7_i32_106 : i32
    %292 = arith.select %290, %c7_i32_106, %291 : i32
    %c8_i32_109 = arith.constant 8 : i32
    %293 = arith.muli %292, %c8_i32_109 : i32
    %294 = tpu.assume_multiple %293, 8 : i32
    %295 = arith.index_cast %294 : i32 to index
    %c0_110 = arith.constant 0 : index
    %296 = vector.load %arg7[%295, %c0_110] : memref<64x384xf32, #tpu.memory_space<vmem>>, vector<8x384xf32>
    %c0_111 = arith.constant 0 : index
    %c0_112 = arith.constant 0 : index
    %c0_113 = arith.constant 0 : index
    %297 = vector.load %arg3[%c0_111, %c0_112, %c0_113] : memref<1x128x384xf32, #tpu.memory_space<vmem>>, vector<1x128x384xf32>
    %298 = vector.shape_cast %297 : vector<1x128x384xf32> to vector<128x384xf32>
    %cst_114 = arith.constant dense<0.000000e+00> : vector<8x384xf32>
    %299 = tpu.matmul %289, %298, %cst_114 {dimension_numbers = #tpu.dot_dimension_numbers<[1], [0], [0], [1], [0, 0, 1, 1], [], []>} : vector<8x128xf32>, vector<128x384xf32>, vector<8x384xf32> -> vector<8x384xf32>
    %c0_115 = arith.constant 0 : index
    %c0_116 = arith.constant 0 : index
    %c0_117 = arith.constant 0 : index
    %300 = vector.load %arg5[%c0_115, %c0_116, %c0_117] : memref<1x1x384xf32, #tpu.memory_space<vmem>>, vector<1x1x384xf32>
    %301 = vector.shape_cast %300 : vector<1x1x384xf32> to vector<1x384xf32>
    %302 = vector.broadcast %301 : vector<1x384xf32> to vector<8x384xf32>
    %303 = arith.addf %299, %302 : vector<8x384xf32>
    %304 = vector.extract_strided_slice %296 {offsets = [0, 0], sizes = [8, 128], strides = [1, 1]} : vector<8x384xf32> to vector<8x128xf32>
    %305 = vector.extract_strided_slice %303 {offsets = [0, 0], sizes = [8, 128], strides = [1, 1]} : vector<8x384xf32> to vector<8x128xf32>
    %306 = arith.addf %304, %305 : vector<8x128xf32>
    %307 = arith.negf %306 : vector<8x128xf32>
    %308 = math.exp %307 : vector<8x128xf32>
    %cst_118 = arith.constant 1.000000e+00 : f32
    %309 = vector.broadcast %cst_118 : f32 to vector<8x128xf32>
    %310 = arith.addf %309, %308 : vector<8x128xf32>
    %311 = arith.divf %309, %310 : vector<8x128xf32>
    %312 = vector.extract_strided_slice %296 {offsets = [0, 128], sizes = [8, 128], strides = [1, 1]} : vector<8x384xf32> to vector<8x128xf32>
    %313 = vector.extract_strided_slice %303 {offsets = [0, 128], sizes = [8, 128], strides = [1, 1]} : vector<8x384xf32> to vector<8x128xf32>
    %314 = arith.addf %312, %313 : vector<8x128xf32>
    %315 = arith.negf %314 : vector<8x128xf32>
    %316 = math.exp %315 : vector<8x128xf32>
    %cst_119 = arith.constant 1.000000e+00 : f32
    %317 = vector.broadcast %cst_119 : f32 to vector<8x128xf32>
    %318 = arith.addf %317, %316 : vector<8x128xf32>
    %319 = arith.divf %317, %318 : vector<8x128xf32>
    %320 = vector.extract_strided_slice %296 {offsets = [0, 256], sizes = [8, 128], strides = [1, 1]} : vector<8x384xf32> to vector<8x128xf32>
    %321 = vector.extract_strided_slice %303 {offsets = [0, 256], sizes = [8, 128], strides = [1, 1]} : vector<8x384xf32> to vector<8x128xf32>
    %322 = arith.mulf %311, %321 : vector<8x128xf32>
    %323 = arith.addf %320, %322 : vector<8x128xf32>
    %324 = math.tanh %323 : vector<8x128xf32>
    %cst_120 = arith.constant 1.000000e+00 : f32
    %325 = vector.broadcast %cst_120 : f32 to vector<8x128xf32>
    %326 = arith.subf %325, %319 : vector<8x128xf32>
    %327 = arith.mulf %326, %324 : vector<8x128xf32>
    %328 = arith.mulf %319, %289 : vector<8x128xf32>
    %329 = arith.addf %327, %328 : vector<8x128xf32>
    %c8_i32_121 = arith.constant 8 : i32
    %c0_122 = arith.constant 0 : index
    %c0_123 = arith.constant 0 : index
    %c0_124 = arith.constant 0 : index
    %330 = vector.load %arg6[%c0_122, %c0_123, %c0_124] : memref<1x8x128xf32, #tpu.memory_space<vmem>>, vector<1x8x128xf32>
    %331 = vector.shape_cast %330 : vector<1x8x128xf32> to vector<8x128xf32>
    %332 = vector.shape_cast %329 : vector<8x128xf32> to vector<1x8x128xf32>
    tpu.vector_store %arg6[%c0_122, %c0_123, %c0_124], %332 {strides = array<i32>} : memref<1x8x128xf32, #tpu.memory_space<vmem>>, vector<1x8x128xf32>,
    return
  }
  func.func @transform_0(%arg0: i32) -> (i32, i32) {
    %c0_i32 = arith.constant 0 : i32
    %c0_i32_0 = arith.constant 0 : i32
    %c0_i32_1 = arith.constant 0 : i32
    return %c0_i32, %c0_i32_0 : i32, i32
  }
  func.func @transform_1(%arg0: i32) -> (i32, i32, i32) {
    %c0_i32 = arith.constant 0 : i32
    %c0_i32_0 = arith.constant 0 : i32
    %c0_i32_1 = arith.constant 0 : i32
    return %arg0, %c0_i32, %c0_i32_0 : i32, i32, i32
  }
  func.func @transform_2(%arg0: i32) -> (i32, i32, i32) {
    %c0_i32 = arith.constant 0 : i32
    %c0_i32_0 = arith.constant 0 : i32
    %c0_i32_1 = arith.constant 0 : i32
    return %arg0, %c0_i32, %c0_i32_0 : i32, i32, i32
  }
  func.func @transform_3(%arg0: i32) -> (i32, i32, i32) {
    %c0_i32 = arith.constant 0 : i32
    %c0_i32_0 = arith.constant 0 : i32
    %c0_i32_1 = arith.constant 0 : i32
    return %arg0, %c0_i32, %c0_i32_0 : i32, i32, i32
  }
  func.func @transform_4(%arg0: i32) -> (i32, i32, i32) {
    %c0_i32 = arith.constant 0 : i32
    %c0_i32_0 = arith.constant 0 : i32
    %c0_i32_1 = arith.constant 0 : i32
    return %arg0, %c0_i32, %c0_i32_0 : i32, i32, i32
  }
  func.func @transform_5(%arg0: i32) -> (i32, i32, i32) {
    %c0_i32 = arith.constant 0 : i32
    %c0_i32_0 = arith.constant 0 : i32
    %c0_i32_1 = arith.constant 0 : i32
    return %arg0, %c0_i32, %c0_i32_0 : i32, i32, i32
  }
}

</mosaic_0001>

<llo_original>
// kernel: tpu_custom_call.1
$region0: #{tpu_custom_call.1}
  #allocation0 [shape = 'u32[]', space=smem, size = 0x4, offset = 0x4, fixed_abs, tag = 'smem constant byte address 0x4 - core index']
  #allocation1 [shape = 'u32[72,128]{1,0:T(1,128)}', space=vmem, size = 0x9000, scoped, tag = 'internal scratch']
  #allocation2 [shape = 'f32[64,384]{1,0:T(8,128)}', space=vmem, size = 0x18000, scoped, tag = 'scratch operand']
  %s0 = inlined_call_operand.vmem [shape: f32[64,16], index: 0, kind: input, shape index: {}]
  %s1 = inlined_call_operand.hbm [shape: f32[2,16,384], index: 1, kind: input, shape index: {}]
  %s2 = inlined_call_operand.hbm [shape: f32[2,128,384], index: 2, kind: input, shape index: {}]
  %s3 = inlined_call_operand.vmem [shape: f32[2,1,384], index: 3, kind: input, shape index: {}]
  %s4 = inlined_call_operand.vmem [shape: f32[2,1,384], index: 4, kind: input, shape index: {}]
  %s5 = inlined_call_operand.hbm [shape: f32[2,8,128], index: 5, kind: output, shape index: {}]
  %s6 = sld [smem:[#allocation0]]
  $region61: #{tpu_custom_call.1} parent=0
    _
  %s8 = ssub.s32 1, %s6
  %s9 = scalar_select 0, %s8, %s6
  $region1: #{tpu_custom_call.1} parent=0
    #allocation3 [shape = 'u8[49152]{0}', space=vmem, size = 0xc000, scoped, tag = 'input window, operand 1']
    #allocation4 [shape = 's32[2]{0}', space=sflag, size = 0x8, scoped, tag = 'scoped memory for tpu_custom_call.1']
    #allocation5 [shape = 's32[2]{0}', space=sflag, size = 0x8, scoped, tag = 'scoped memory for tpu_custom_call.1']
    #allocation6 [shape = 'u8[393216]{0}', space=vmem, size = 0x60000, scoped, tag = 'input window, operand 2']
    #allocation7 [shape = 's32[2]{0}', space=sflag, size = 0x8, scoped, tag = 'scoped memory for tpu_custom_call.1']
    #allocation8 [shape = 'u8[8192]{0}', space=vmem, size = 0x2000, scoped, tag = 'output window, operand 0']
    %10 = vsyncpa [#allocation4], 0
    %s11 = scalar_lea.sflag [#allocation4], 1
    %12 = vsyncpa %s11, 0
    %13 = vsyncpa [#allocation7], 0
    %s14 = scalar_lea.sflag [#allocation7], 1
    %15 = vsyncpa %s14, 0
    %16 = vsyncpa [#allocation5], 0
    %s17 = scalar_lea.sflag [#allocation5], 1
    %18 = vsyncpa %s17, 0
    loop: start=0, step=1, limit=4
    $region2: #{tpu_custom_call.1} parent=1 // loop_pre_header
      _
    $region3: #{tpu_custom_call.1} parent=1 // loop_header
      %s20 = sphi 0, %s24
      %p21 = scmp.ge.s32.totalorder %s20, 4
      %s28 = sphi 0, %s28
      %s30 = sphi 0, %s28
      %s31 = sphi 0, %s30
      %s45 = sphi 0, %s31
      %s51 = sphi 0, %s53
      %s54 = sphi 0, %s51
      %s55 = sphi 0, %s54
      %s71 = sphi 0, %s55
      %s77 = sphi 0, %s79
      %s80 = sphi 0, %s77
      %s81 = sphi 0, %s80
      %s97 = sphi 0, %s81
      %s103 = sphi 0, %s105
      %s106 = sphi 0, %s103
      %s107 = sphi 0, %s106
      %s123 = sphi 0, %s107
      %s129 = sphi 0, %s131
      %s132 = sphi 0, %s129
      %s133 = sphi 0, %s132
      %s149 = sphi 0, %s133
      %s155 = sphi 0, %s157
      %s158 = sphi 0, %s155
      %s159 = sphi 0, %s158
      %s175 = sphi 0, %s159
    $region4: #{tpu_custom_call.1} parent=1 // loop_header_branch
      %23 = sbr.rel (%p21) target = $region8
    $region5: #{tpu_custom_call.1} parent=1 // loop_body
      %s25 = ssub.s32 %s20, 1
      %s26 = ssub.s32 %s20, 2
      %s27 = sadd.s32 %s20, 1
      %s29 = sadd.s32 %s28, 1
      %p32 = scmp.eq.s32.totalorder %s20, 1
      %p33 = scmp.ne.s32.totalorder %s28, %s30
      %p34 = scmp.eq.s32.totalorder %s20, 0
      %p35 = por %p33, %p34
      %p36 = scmp.ne.s32.totalorder %s28, %s30
      %p37 = scmp.eq.s32.totalorder %s25, 1
      %p38 = por %p36, %p37
      %p39 = scmp.ne.s32.totalorder %s30, %s31
      %p40 = scmp.eq.s32.totalorder %s25, 0
      %p41 = por %p39, %p40
      %p42 = scmp.ne.s32.totalorder %s30, %s31
      %p43 = scmp.eq.s32.totalorder %s26, 1
      %p44 = por %p42, %p43
      %p46 = scmp.ne.s32.totalorder %s31, %s45
      %p47 = scmp.eq.s32.totalorder %s26, 0
      %p48 = por %p46, %p47
      %s49 = ssub.s32 %s20, %s27
      %p50 = scmp.eq.s32.totalorder %s49, 0
      %s52 = sadd.s32 %s51, 1
      %s53 = scalar_select %p50, %s51, %s52
      %p56 = pneg %p50
      %p57 = scmp.eq.s32.totalorder %s20, 1
      %p58 = por %p56, %p57
      %p59 = scmp.ne.s32.totalorder %s51, %s54
      %p60 = scmp.eq.s32.totalorder %s20, 0
      %p61 = por %p59, %p60
      %p62 = scmp.ne.s32.totalorder %s51, %s54
      %p63 = scmp.eq.s32.totalorder %s25, 1
      %p64 = por %p62, %p63
      %p65 = scmp.ne.s32.totalorder %s54, %s55
      %p66 = scmp.eq.s32.totalorder %s25, 0
      %p67 = por %p65, %p66
      %p68 = scmp.ne.s32.totalorder %s54, %s55
      %p69 = scmp.eq.s32.totalorder %s26, 1
      %p70 = por %p68, %p69
      %p72 = scmp.ne.s32.totalorder %s55, %s71
      %p73 = scmp.eq.s32.totalorder %s26, 0
      %p74 = por %p72, %p73
      %s75 = ssub.s32 %s20, %s27
      %p76 = scmp.eq.s32.totalorder %s75, 0
      %s78 = sadd.s32 %s77, 1
      %s79 = scalar_select %p76, %s77, %s78
      %p82 = pneg %p76
      %p83 = scmp.eq.s32.totalorder %s20, 1
      %p84 = por %p82, %p83
      %p85 = scmp.ne.s32.totalorder %s77, %s80
      %p86 = scmp.eq.s32.totalorder %s20, 0
      %p87 = por %p85, %p86
      %p88 = scmp.ne.s32.totalorder %s77, %s80
      %p89 = scmp.eq.s32.totalorder %s25, 1
      %p90 = por %p88, %p89
      %p91 = scmp.ne.s32.totalorder %s80, %s81
      %p92 = scmp.eq.s32.totalorder %s25, 0
      %p93 = por %p91, %p92
      %p94 = scmp.ne.s32.totalorder %s80, %s81
      %p95 = scmp.eq.s32.totalorder %s26, 1
      %p96 = por %p94, %p95
      %p98 = scmp.ne.s32.totalorder %s81, %s97
      %p99 = scmp.eq.s32.totalorder %s26, 0
      %p100 = por %p98, %p99
      %s101 = ssub.s32 %s20, %s27
      %p102 = scmp.eq.s32.totalorder %s101, 0
      %s104 = sadd.s32 %s103, 1
      %s105 = scalar_select %p102, %s103, %s104
      %p108 = pneg %p102
      %p109 = scmp.eq.s32.totalorder %s20, 1
      %p110 = por %p108, %p109
      %p111 = scmp.ne.s32.totalorder %s103, %s106
      %p112 = scmp.eq.s32.totalorder %s20, 0
      %p113 = por %p111, %p112
      %p114 = scmp.ne.s32.totalorder %s103, %s106
      %p115 = scmp.eq.s32.totalorder %s25, 1
      %p116 = por %p114, %p115
      %p117 = scmp.ne.s32.totalorder %s106, %s107
      %p118 = scmp.eq.s32.totalorder %s25, 0
      %p119 = por %p117, %p118
      %p120 = scmp.ne.s32.totalorder %s106, %s107
      %p121 = scmp.eq.s32.totalorder %s26, 1
      %p122 = por %p120, %p121
      %p124 = scmp.ne.s32.totalorder %s107, %s123
      %p125 = scmp.eq.s32.totalorder %s26, 0
      %p126 = por %p124, %p125
      %s127 = ssub.s32 %s20, %s27
      %p128 = scmp.eq.s32.totalorder %s127, 0
      %s130 = sadd.s32 %s129, 1
      %s131 = scalar_select %p128, %s129, %s130
      %p134 = pneg %p128
      %p135 = scmp.eq.s32.totalorder %s20, 1
      %p136 = por %p134, %p135
      %p137 = scmp.ne.s32.totalorder %s129, %s132
      %p138 = scmp.eq.s32.totalorder %s20, 0
      %p139 = por %p137, %p138
      %p140 = scmp.ne.s32.totalorder %s129, %s132
      %p141 = scmp.eq.s32.totalorder %s25, 1
      %p142 = por %p140, %p141
      %p143 = scmp.ne.s32.totalorder %s132, %s133
      %p144 = scmp.eq.s32.totalorder %s25, 0
      %p145 = por %p143, %p144
      %p146 = scmp.ne.s32.totalorder %s132, %s133
      %p147 = scmp.eq.s32.totalorder %s26, 1
      %p148 = por %p146, %p147
      %p150 = scmp.ne.s32.totalorder %s133, %s149
      %p151 = scmp.eq.s32.totalorder %s26, 0
      %p152 = por %p150, %p151
      %s153 = ssub.s32 %s20, %s27
      %p154 = scmp.eq.s32.totalorder %s153, 0
      %s156 = sadd.s32 %s155, 1
      %s157 = scalar_select %p154, %s155, %s156
      %p160 = pneg %p154
      %p161 = scmp.eq.s32.totalorder %s20, 1
      %p162 = por %p160, %p161
      %p163 = scmp.ne.s32.totalorder %s155, %s158
      %p164 = scmp.eq.s32.totalorder %s20, 0
      %p165 = por %p163, %p164
      %p166 = scmp.ne.s32.totalorder %s155, %s158
      %p167 = scmp.eq.s32.totalorder %s25, 1
      %p168 = por %p166, %p167
      %p169 = scmp.ne.s32.totalorder %s158, %s159
      %p170 = scmp.eq.s32.totalorder %s25, 0
      %p171 = por %p169, %p170
      %p172 = scmp.ne.s32.totalorder %s158, %s159
      %p173 = scmp.eq.s32.totalorder %s26, 1
      %p174 = por %p172, %p173
      %p176 = scmp.ne.s32.totalorder %s159, %s175
      %p177 = scmp.eq.s32.totalorder %s26, 0
      %p178 = por %p176, %p177
      %p179 = scmp.le.s32.totalorder 1, %s20
      %p180 = scmp.lt.s32.totalorder %s20, 3
      %p181 = pnand %p179, %p180
      %p182 = pneg %p181
      // Predicated region
      $region9: #{tpu_custom_call.1} parent=5 // pred_check
        _
      $region10: #{tpu_custom_call.1} parent=5 // pred_check_branch
        %184 = sbr.rel (%p181) target = $region12
      $region11: #{tpu_custom_call.1} parent=5 // pred_region
        %s185 = ssub.s32 %s20, 1
        // Predicated region
        $region13: #{tpu_custom_call.1} parent=11 // pred_check
          %p186 = pneg %p41
        $region14: #{tpu_custom_call.1} parent=11 // pred_check_branch
          %188 = sbr.rel (%p186) target = $region16
        $region15: #{tpu_custom_call.1} parent=11 // pred_region
          _
        $region16: #{tpu_custom_call.1} parent=11 // pred_fallthru
          _
      $region12: #{tpu_custom_call.1} parent=5 // pred_fallthru
        _
      %p189 = scmp.lt.s32.totalorder %s20, 2
      // Predicated region
      $region17: #{tpu_custom_call.1} parent=5 // pred_check
        %p190 = pneg %p189
      $region18: #{tpu_custom_call.1} parent=5 // pred_check_branch
        %192 = sbr.rel (%p190) target = $region20
      $region19: #{tpu_custom_call.1} parent=5 // pred_region
        // Predicated region
        $region21: #{tpu_custom_call.1} parent=19 // pred_check
          %p193 = pneg %p61
        $region22: #{tpu_custom_call.1} parent=19 // pred_check_branch
          %195 = sbr.rel (%p193) target = $region24
        $region23: #{tpu_custom_call.1} parent=19 // pred_region
          %s196 = sand.u32 %s51, 1
          %s197 = scalar_lea.sflag [#allocation4], %s196
          %s198 = sand.u32 %s51, 1
          %s199 = smul.addr %s198, 48
          %s200 = scalar_lea.vmem [#allocation3], %s199
          %202 = vsyncadd %s197, 0
          %s203 = smul.addr %s20, 6
          %s204 = smul.addr %s203, 8
          %s205 = scalar_lea.hbm %s1, %s204
          %s206 = sshll.u32 %s205, 4
          %s207 = int_to_ptr.hbm [resolvable:$true] %s206
          %s208 = sshll.u32 %s200, 4
          %s209 = int_to_ptr.vmem [resolvable:$true] %s208
          %214 = dma.hbm_to_vmem [thread:$0]  %s207, 768, %s209, %s197, 384, 384, 24
        $region24: #{tpu_custom_call.1} parent=19 // pred_fallthru
          _
        // Predicated region
        $region25: #{tpu_custom_call.1} parent=19 // pred_check
          %p215 = pneg %p87
        $region26: #{tpu_custom_call.1} parent=19 // pred_check_branch
          %217 = sbr.rel (%p215) target = $region28
        $region27: #{tpu_custom_call.1} parent=19 // pred_region
          %s218 = sand.u32 %s77, 1
          %s219 = scalar_lea.sflag [#allocation7], %s218
          %s220 = sand.u32 %s77, 1
          %s221 = smul.addr %s220, 384
          %s222 = scalar_lea.vmem [#allocation6], %s221
          %224 = vsyncadd %s219, 0
          %s225 = smul.addr %s20, 48
          %s226 = smul.addr %s225, 8
          %s227 = scalar_lea.hbm %s2, %s226
          %s228 = sshll.u32 %s227, 4
          %s229 = int_to_ptr.hbm [resolvable:$true] %s228
          %s230 = sshll.u32 %s222, 4
          %s231 = int_to_ptr.vmem [resolvable:$true] %s230
          %236 = dma.hbm_to_vmem [thread:$0]  %s229, 6144, %s231, %s219, 384, 384, 24
        $region28: #{tpu_custom_call.1} parent=19 // pred_fallthru
          _
        // Predicated region
        $region29: #{tpu_custom_call.1} parent=19 // pred_check
          %p237 = pneg %p113
        $region30: #{tpu_custom_call.1} parent=19 // pred_check_branch
          %239 = sbr.rel (%p237) target = $region32
        $region31: #{tpu_custom_call.1} parent=19 // pred_region
          %p240 = scmp.lt.s32.totalorder %s20, 1
          %s241 = scalar_select %p240, %s20, 1
          %s242 = smul.addr %s241, 3
          %s243 = scalar_lea.vmem %s3, %s242
        $region32: #{tpu_custom_call.1} parent=19 // pred_fallthru
          _
        // Predicated region
        $region33: #{tpu_custom_call.1} parent=19 // pred_check
          %p244 = pneg %p139
        $region34: #{tpu_custom_call.1} parent=19 // pred_check_branch
          %246 = sbr.rel (%p244) target = $region36
        $region35: #{tpu_custom_call.1} parent=19 // pred_region
          %p247 = scmp.lt.s32.totalorder %s20, 1
          %s248 = scalar_select %p247, %s20, 1
          %s249 = smul.addr %s248, 3
          %s250 = scalar_lea.vmem %s4, %s249
        $region36: #{tpu_custom_call.1} parent=19 // pred_fallthru
          _
      $region20: #{tpu_custom_call.1} parent=5 // pred_fallthru
        _
      %p251 = scmp.le.s32.totalorder 1, %s20
      %p252 = scmp.lt.s32.totalorder %s20, 3
      %p253 = pnand %p251, %p252
      %p254 = pneg %p253
      // Predicated region
      $region37: #{tpu_custom_call.1} parent=5 // pred_check
        _
      $region38: #{tpu_custom_call.1} parent=5 // pred_check_branch
        %256 = sbr.rel (%p253) target = $region40
      $region39: #{tpu_custom_call.1} parent=5 // pred_region
        %s257 = ssub.s32 %s20, 1
        %s258 = sand.u32 %s54, 1
        %s259 = scalar_lea.sflag [#allocation4], %s258
        %s260 = sand.u32 %s54, 1
        %s261 = smul.addr %s260, 48
        %s262 = scalar_lea.vmem [#allocation3], %s261
        // Predicated region
        $region41: #{tpu_custom_call.1} parent=39 // pred_check
          %p263 = pneg %p67
        $region42: #{tpu_custom_call.1} parent=39 // pred_check_branch
          %265 = sbr.rel (%p263) target = $region44
        $region43: #{tpu_custom_call.1} parent=39 // pred_region
          %267 = dma.done %s259, 768
        $region44: #{tpu_custom_call.1} parent=39 // pred_fallthru
          _
        %s268 = sand.u32 %s80, 1
        %s269 = scalar_lea.sflag [#allocation7], %s268
        %s270 = sand.u32 %s80, 1
        %s271 = smul.addr %s270, 384
        %s272 = scalar_lea.vmem [#allocation6], %s271
        // Predicated region
        $region45: #{tpu_custom_call.1} parent=39 // pred_check
          %p273 = pneg %p93
        $region46: #{tpu_custom_call.1} parent=39 // pred_check_branch
          %275 = sbr.rel (%p273) target = $region48
        $region47: #{tpu_custom_call.1} parent=39 // pred_region
          %277 = dma.done %s269, 6144
        $region48: #{tpu_custom_call.1} parent=39 // pred_fallthru
          _
        %p278 = pneg %p41
        %p279 = pneg %p38
        %s280 = sand.u32 %s54, 1
        %s281 = scalar_lea.sflag [#allocation4], %s280
        %s282 = sand.u32 %s54, 1
        %s283 = smul.addr %s282, 48
        %s284 = scalar_lea.vmem [#allocation3], %s283
        %p285 = pneg %p67
        %p286 = pneg %p64
        %s287 = sand.u32 %s80, 1
        %s288 = scalar_lea.sflag [#allocation7], %s287
        %s289 = sand.u32 %s80, 1
        %s290 = smul.addr %s289, 384
        %s291 = scalar_lea.vmem [#allocation6], %s290
        %p292 = pneg %p93
        %p293 = pneg %p90
        %p294 = scmp.lt.s32.totalorder %s25, 1
        %s295 = scalar_select %p294, %s25, 1
        %s296 = smul.addr %s295, 3
        %s297 = scalar_lea.vmem %s3, %s296
        %p298 = pneg %p119
        %p299 = pneg %p116
        %p300 = scmp.lt.s32.totalorder %s25, 1
        %s301 = scalar_select %p300, %s25, 1
        %s302 = smul.addr %s301, 3
        %s303 = scalar_lea.vmem %s4, %s302
        %p304 = pneg %p145
        %p305 = pneg %p142
        %p306 = pneg %p171
        %p307 = pneg %p168
        %s308 = sand.u32 %s158, 1
        %s309 = scalar_lea.sflag [#allocation5], %s308
        %s310 = sand.u32 %s158, 1
        %s311 = smul.addr %s310, 8
        %s312 = scalar_lea.vmem [#allocation8], %s311
        %p313 = scmp.lt.s32.totalorder %s25, 1
        %s314 = scalar_select %p313, %s25, 1
        %s315 = smul.addr %s314, 3
        %s316 = scalar_lea.vmem %s3, %s315
        %p317 = scmp.lt.s32.totalorder %s25, 1
        %s318 = scalar_select %p317, %s25, 1
        %s319 = smul.addr %s318, 3
        %s320 = scalar_lea.vmem %s4, %s319
        %v321 = vld [vmem:[%s0] sm:$0xff]
        %v322 = vld [vmem:[%s0 + $0x8] sm:$0xff]
        %v323 = vld [vmem:[%s0 + $0x10] sm:$0xff]
        %v324 = vld [vmem:[%s0 + $0x18] sm:$0xff]
        %v325 = vld [vmem:[%s0 + $0x20] sm:$0xff]
        %v326 = vld [vmem:[%s0 + $0x28] sm:$0xff]
        %v327 = vld [vmem:[%s0 + $0x30] sm:$0xff]
        %v328 = vld [vmem:[%s0 + $0x38] sm:$0xff]
        %v329 = vld [vmem:[%s262] sm:$0xff]
        %v330 = vld [vmem:[%s262 + $0x8] sm:$0xff]
        %v331 = vld [vmem:[%s262 + $0x10] sm:$0xff]
        %v332 = vld [vmem:[%s262 + $0x18] sm:$0xff]
        %v333 = vld [vmem:[%s262 + $0x20] sm:$0xff]
        %v334 = vld [vmem:[%s262 + $0x28] sm:$0xff]
        %v335 = vld [vmem:[%s316] sm:$0x7]
        %v337 = vperm.slane %v335, 0
        %v338 = vperm.slane %v335, 1
        %v339 = vperm.slane %v335, 2
        %vm343 = vcmask 130048
        %v345 = vsel %vm343, %v321, 0
        %v348 = vsel %vm343, %v322, 0
        %v351 = vsel %vm343, %v323, 0
        %v354 = vsel %vm343, %v324, 0
        %v357 = vsel %vm343, %v325, 0
        %v360 = vsel %vm343, %v326, 0
        %v363 = vsel %vm343, %v327, 0
        %v366 = vsel %vm343, %v328, 0
        %368 = vmatpush.msra.mxu0 0.0
        %369 = vmatpush.msra.mxu0 0.0
        %370 = vmatpush.msra.mxu0 0.0
        %371 = vmatpush.msra.mxu0 0.0
        %372 = vmatpush.msra.mxu0 0.0
        %373 = vmatpush.msra.mxu0 0.0
        %374 = vmatpush.msra.mxu0 0.0
        %375 = vmatpush.msra.mxu0 0.0
        %376 = vmatpush.msra.mxu0 0.0
        %377 = vmatpush.msra.mxu0 0.0
        %378 = vmatpush.msra.mxu0 0.0
        %379 = vmatpush.msra.mxu0 0.0
        %380 = vmatpush.msra.mxu0 0.0
        %381 = vmatpush.msra.mxu0 0.0
        %382 = vmatpush.msra.mxu0 %v332
        %383 = vmatpush.msra.mxu0 %v329
        %384 = vmatmul.f32.gmra.mxu0 %v345
        %v385 = vpop.f32.mrf.mxu0
        %v386 = vadd.f32 %v337, %v385
        %387 = vmatmul.f32.gmra.mxu0 %v348
        %v388 = vpop.f32.mrf.mxu0
        %v389 = vadd.f32 %v337, %v388
        %390 = vmatmul.f32.gmra.mxu0 %v351
        %v391 = vpop.f32.mrf.mxu0
        %v392 = vadd.f32 %v337, %v391
        %393 = vmatmul.f32.gmra.mxu0 %v354
        %v394 = vpop.f32.mrf.mxu0
        %v395 = vadd.f32 %v337, %v394
        %396 = vmatmul.f32.gmra.mxu0 %v357
        %v397 = vpop.f32.mrf.mxu0
        %v398 = vadd.f32 %v337, %v397
        %399 = vmatmul.f32.gmra.mxu0 %v360
        %v400 = vpop.f32.mrf.mxu0
        %v401 = vadd.f32 %v337, %v400
        %402 = vmatmul.f32.gmra.mxu0 %v363
        %v403 = vpop.f32.mrf.mxu0
        %v404 = vadd.f32 %v337, %v403
        %405 = vmatmul.f32.gmra.mxu0 %v366
        %v406 = vpop.f32.mrf.mxu0
        %v407 = vadd.f32 %v337, %v406
        %408 = vdwg.mxu0
        %409 = vmatpush.msra.mxu0 0.0
        %410 = vmatpush.msra.mxu0 0.0
        %411 = vmatpush.msra.mxu0 0.0
        %412 = vmatpush.msra.mxu0 0.0
        %413 = vmatpush.msra.mxu0 0.0
        %414 = vmatpush.msra.mxu0 0.0
        %415 = vmatpush.msra.mxu0 0.0
        %416 = vmatpush.msra.mxu0 0.0
        %417 = vmatpush.msra.mxu0 0.0
        %418 = vmatpush.msra.mxu0 0.0
        %419 = vmatpush.msra.mxu0 0.0
        %420 = vmatpush.msra.mxu0 0.0
        %421 = vmatpush.msra.mxu0 0.0
        %422 = vmatpush.msra.mxu0 0.0
        %423 = vmatpush.msra.mxu0 %v333
        %424 = vmatpush.msra.mxu0 %v330
        %425 = vmatmul.f32.gmra.mxu0 %v345
        %v426 = vpop.f32.mrf.mxu0
        %v427 = vadd.f32 %v338, %v426
        %428 = vmatmul.f32.gmra.mxu0 %v348
        %v429 = vpop.f32.mrf.mxu0
        %v430 = vadd.f32 %v338, %v429
        %431 = vmatmul.f32.gmra.mxu0 %v351
        %v432 = vpop.f32.mrf.mxu0
        %v433 = vadd.f32 %v338, %v432
        %434 = vmatmul.f32.gmra.mxu0 %v354
        %v435 = vpop.f32.mrf.mxu0
        %v436 = vadd.f32 %v338, %v435
        %437 = vmatmul.f32.gmra.mxu0 %v357
        %v438 = vpop.f32.mrf.mxu0
        %v439 = vadd.f32 %v338, %v438
        %440 = vmatmul.f32.gmra.mxu0 %v360
        %v441 = vpop.f32.mrf.mxu0
        %v442 = vadd.f32 %v338, %v441
        %443 = vmatmul.f32.gmra.mxu0 %v363
        %v444 = vpop.f32.mrf.mxu0
        %v445 = vadd.f32 %v338, %v444
        %446 = vmatmul.f32.gmra.mxu0 %v366
        %v447 = vpop.f32.mrf.mxu0
        %v448 = vadd.f32 %v338, %v447
        %449 = vdwg.mxu0
        %450 = vmatpush.msra.mxu0 0.0
        %451 = vmatpush.msra.mxu0 0.0
        %452 = vmatpush.msra.mxu0 0.0
        %453 = vmatpush.msra.mxu0 0.0
        %454 = vmatpush.msra.mxu0 0.0
        %455 = vmatpush.msra.mxu0 0.0
        %456 = vmatpush.msra.mxu0 0.0
        %457 = vmatpush.msra.mxu0 0.0
        %458 = vmatpush.msra.mxu0 0.0
        %459 = vmatpush.msra.mxu0 0.0
        %460 = vmatpush.msra.mxu0 0.0
        %461 = vmatpush.msra.mxu0 0.0
        %462 = vmatpush.msra.mxu0 0.0
        %463 = vmatpush.msra.mxu0 0.0
        %464 = vmatpush.msra.mxu0 %v334
        %465 = vmatpush.msra.mxu0 %v331
        %466 = vmatmul.f32.gmra.mxu0 %v345
        %v467 = vpop.f32.mrf.mxu0
        %v468 = vadd.f32 %v339, %v467
        %469 = vmatmul.f32.gmra.mxu0 %v348
        %v470 = vpop.f32.mrf.mxu0
        %v471 = vadd.f32 %v339, %v470
        %472 = vmatmul.f32.gmra.mxu0 %v351
        %v473 = vpop.f32.mrf.mxu0
        %v474 = vadd.f32 %v339, %v473
        %475 = vmatmul.f32.gmra.mxu0 %v354
        %v476 = vpop.f32.mrf.mxu0
        %v477 = vadd.f32 %v339, %v476
        %478 = vmatmul.f32.gmra.mxu0 %v357
        %v479 = vpop.f32.mrf.mxu0
        %v480 = vadd.f32 %v339, %v479
        %481 = vmatmul.f32.gmra.mxu0 %v360
        %v482 = vpop.f32.mrf.mxu0
        %v483 = vadd.f32 %v339, %v482
        %484 = vmatmul.f32.gmra.mxu0 %v363
        %v485 = vpop.f32.mrf.mxu0
        %v486 = vadd.f32 %v339, %v485
        %487 = vmatmul.f32.gmra.mxu0 %v366
        %v488 = vpop.f32.mrf.mxu0
        %v489 = vadd.f32 %v339, %v488
        %490 = vdwg.mxu0
        %491 = vst [vmem:[#allocation2] sm:$0xff] %v386
        %492 = vst [vmem:[#allocation2 + $0x8] sm:$0xff] %v427
        %493 = vst [vmem:[#allocation2 + $0x10] sm:$0xff] %v468
        %494 = vst [vmem:[#allocation2 + $0x18] sm:$0xff] %v389
        %495 = vst [vmem:[#allocation2 + $0x20] sm:$0xff] %v430
        %496 = vst [vmem:[#allocation2 + $0x28] sm:$0xff] %v471
        %497 = vst [vmem:[#allocation2 + $0x30] sm:$0xff] %v392
        %498 = vst [vmem:[#allocation2 + $0x38] sm:$0xff] %v433
        %499 = vst [vmem:[#allocation2 + $0x40] sm:$0xff] %v474
        %500 = vst [vmem:[#allocation2 + $0x48] sm:$0xff] %v395
        %501 = vst [vmem:[#allocation2 + $0x50] sm:$0xff] %v436
        %502 = vst [vmem:[#allocation2 + $0x58] sm:$0xff] %v477
        %503 = vst [vmem:[#allocation2 + $0x60] sm:$0xff] %v398
        %504 = vst [vmem:[#allocation2 + $0x68] sm:$0xff] %v439
        %505 = vst [vmem:[#allocation2 + $0x70] sm:$0xff] %v480
        %506 = vst [vmem:[#allocation2 + $0x78] sm:$0xff] %v401
        %507 = vst [vmem:[#allocation2 + $0x80] sm:$0xff] %v442
        %508 = vst [vmem:[#allocation2 + $0x88] sm:$0xff] %v483
        %509 = vst [vmem:[#allocation2 + $0x90] sm:$0xff] %v404
        %510 = vst [vmem:[#allocation2 + $0x98] sm:$0xff] %v445
        %511 = vst [vmem:[#allocation2 + $0xa0] sm:$0xff] %v486
        %512 = vst [vmem:[#allocation2 + $0xa8] sm:$0xff] %v407
        %513 = vst [vmem:[#allocation2 + $0xb0] sm:$0xff] %v448
        %514 = vst [vmem:[#allocation2 + $0xb8] sm:$0xff] %v489
        %p515 = scmp.eq.s32.totalorder %s25, 0
        %s516 = scalar_select %p515, 0, 7
        %s517 = smul.u32 %s516, 8
        %s518 = sshra.s32 %s517, 3
        %s519 = sand.u32 %s517, 7
        %s520 = smul.u32 %s518, 3
        %s521 = smul.addr %s520, 8
        %s522 = scalar_lea.vmem [#allocation2], %s521
        %v523 = vld [vmem:[%s522] sm:$0xff]
        %v524 = vld [vmem:[%s522 + $0x8] sm:$0xff]
        %v525 = vld [vmem:[%s522 + $0x10] sm:$0xff]
        %v526 = vld [vmem:[%s272] sm:$0xff]
        %v527 = vld [vmem:[%s272 + $0x8] sm:$0xff]
        %v528 = vld [vmem:[%s272 + $0x10] sm:$0xff]
        %v529 = vld [vmem:[%s272 + $0x18] sm:$0xff]
        %v530 = vld [vmem:[%s272 + $0x20] sm:$0xff]
        %v531 = vld [vmem:[%s272 + $0x28] sm:$0xff]
        %v532 = vld [vmem:[%s272 + $0x30] sm:$0xff]
        %v533 = vld [vmem:[%s272 + $0x38] sm:$0xff]
        %v534 = vld [vmem:[%s272 + $0x40] sm:$0xff]
        %v535 = vld [vmem:[%s272 + $0x48] sm:$0xff]
        %v536 = vld [vmem:[%s272 + $0x50] sm:$0xff]
        %v537 = vld [vmem:[%s272 + $0x58] sm:$0xff]
        %v538 = vld [vmem:[%s272 + $0x60] sm:$0xff]
        %v539 = vld [vmem:[%s272 + $0x68] sm:$0xff]
        %v540 = vld [vmem:[%s272 + $0x70] sm:$0xff]
        %v541 = vld [vmem:[%s272 + $0x78] sm:$0xff]
        %v542 = vld [vmem:[%s272 + $0x80] sm:$0xff]
        %v543 = vld [vmem:[%s272 + $0x88] sm:$0xff]
        %v544 = vld [vmem:[%s272 + $0x90] sm:$0xff]
        %v545 = vld [vmem:[%s272 + $0x98] sm:$0xff]
        %v546 = vld [vmem:[%s272 + $0xa0] sm:$0xff]
        %v547 = vld [vmem:[%s272 + $0xa8] sm:$0xff]
        %v548 = vld [vmem:[%s272 + $0xb0] sm:$0xff]
        %v549 = vld [vmem:[%s272 + $0xb8] sm:$0xff]
        %v550 = vld [vmem:[%s272 + $0xc0] sm:$0xff]
        %v551 = vld [vmem:[%s272 + $0xc8] sm:$0xff]
        %v552 = vld [vmem:[%s272 + $0xd0] sm:$0xff]
        %v553 = vld [vmem:[%s272 + $0xd8] sm:$0xff]
        %v554 = vld [vmem:[%s272 + $0xe0] sm:$0xff]
        %v555 = vld [vmem:[%s272 + $0xe8] sm:$0xff]
        %v556 = vld [vmem:[%s272 + $0xf0] sm:$0xff]
        %v557 = vld [vmem:[%s272 + $0xf8] sm:$0xff]
        %v558 = vld [vmem:[%s272 + $0x100] sm:$0xff]
        %v559 = vld [vmem:[%s272 + $0x108] sm:$0xff]
        %v560 = vld [vmem:[%s272 + $0x110] sm:$0xff]
        %v561 = vld [vmem:[%s272 + $0x118] sm:$0xff]
        %v562 = vld [vmem:[%s272 + $0x120] sm:$0xff]
        %v563 = vld [vmem:[%s272 + $0x128] sm:$0xff]
        %v564 = vld [vmem:[%s272 + $0x130] sm:$0xff]
        %v565 = vld [vmem:[%s272 + $0x138] sm:$0xff]
        %v566 = vld [vmem:[%s272 + $0x140] sm:$0xff]
        %v567 = vld [vmem:[%s272 + $0x148] sm:$0xff]
        %v568 = vld [vmem:[%s272 + $0x150] sm:$0xff]
        %v569 = vld [vmem:[%s272 + $0x158] sm:$0xff]
        %v570 = vld [vmem:[%s272 + $0x160] sm:$0xff]
        %v571 = vld [vmem:[%s272 + $0x168] sm:$0xff]
        %v572 = vld [vmem:[%s272 + $0x170] sm:$0xff]
        %v573 = vld [vmem:[%s272 + $0x178] sm:$0xff]
        %v574 = vld [vmem:[%s320] sm:$0x7]
        %v576 = vperm.slane %v574, 0
        %v577 = vperm.slane %v574, 1
        %v578 = vperm.slane %v574, 2
        %582 = vmatpush.msra.mxu0 %v571
        %583 = vmatpush.msra.mxu0 %v568
        %584 = vmatpush.msra.mxu0 %v565
        %585 = vmatpush.msra.mxu0 %v562
        %586 = vmatpush.msra.mxu0 %v559
        %587 = vmatpush.msra.mxu0 %v556
        %588 = vmatpush.msra.mxu0 %v553
        %589 = vmatpush.msra.mxu0 %v550
        %590 = vmatpush.msra.mxu0 %v547
        %591 = vmatpush.msra.mxu0 %v544
        %592 = vmatpush.msra.mxu0 %v541
        %593 = vmatpush.msra.mxu0 %v538
        %594 = vmatpush.msra.mxu0 %v535
        %595 = vmatpush.msra.mxu0 %v532
        %596 = vmatpush.msra.mxu0 %v529
        %597 = vmatpush.msra.mxu0 %v526
        %598 = vmatmul.f32.gmra.mxu0 0.0
        %v599 = vpop.f32.mrf.mxu0
        %v600 = vadd.f32 %v576, %v599
        %601 = vdwg.mxu0
        %602 = vmatpush.msra.mxu0 %v572
        %603 = vmatpush.msra.mxu0 %v569
        %604 = vmatpush.msra.mxu0 %v566
        %605 = vmatpush.msra.mxu0 %v563
        %606 = vmatpush.msra.mxu0 %v560
        %607 = vmatpush.msra.mxu0 %v557
        %608 = vmatpush.msra.mxu0 %v554
        %609 = vmatpush.msra.mxu0 %v551
        %610 = vmatpush.msra.mxu0 %v548
        %611 = vmatpush.msra.mxu0 %v545
        %612 = vmatpush.msra.mxu0 %v542
        %613 = vmatpush.msra.mxu0 %v539
        %614 = vmatpush.msra.mxu0 %v536
        %615 = vmatpush.msra.mxu0 %v533
        %616 = vmatpush.msra.mxu0 %v530
        %617 = vmatpush.msra.mxu0 %v527
        %618 = vmatmul.f32.gmra.mxu0 0.0
        %v619 = vpop.f32.mrf.mxu0
        %v620 = vadd.f32 %v577, %v619
        %621 = vdwg.mxu0
        %622 = vmatpush.msra.mxu0 %v573
        %623 = vmatpush.msra.mxu0 %v570
        %624 = vmatpush.msra.mxu0 %v567
        %625 = vmatpush.msra.mxu0 %v564
        %626 = vmatpush.msra.mxu0 %v561
        %627 = vmatpush.msra.mxu0 %v558
        %628 = vmatpush.msra.mxu0 %v555
        %629 = vmatpush.msra.mxu0 %v552
        %630 = vmatpush.msra.mxu0 %v549
        %631 = vmatpush.msra.mxu0 %v546
        %632 = vmatpush.msra.mxu0 %v543
        %633 = vmatpush.msra.mxu0 %v540
        %634 = vmatpush.msra.mxu0 %v537
        %635 = vmatpush.msra.mxu0 %v534
        %636 = vmatpush.msra.mxu0 %v531
        %637 = vmatpush.msra.mxu0 %v528
        %638 = vmatmul.f32.gmra.mxu0 0.0
        %v639 = vpop.f32.mrf.mxu0
        %v640 = vadd.f32 %v578, %v639
        %641 = vdwg.mxu0
        %v642 = vadd.f32 %v523, %v600
        %v643 = vxor.u32 %v642, 2147483648
        %v644 = vmul.f32 %v643, 1.442695
        %v645 = vpow.pop %v644
        %v646 = vadd.f32 %v645, 1.0
        %v647 = vrcp.pop %v646
        %v648 = vmul.f32 %v646, %v647
        %v649 = vsub.f32 1.0, %v648
        %v650 = vmul.f32 %v647, %v649
        %v651 = vadd.f32 %v647, %v650
        %vm652 = vweird.f32 %v646
        %vm653 = vweird.f32 %v647
        %vm654 = vmor %vm652, %vm653
        %v655 = vsel %vm654, %v647, %v651
        %v656 = vand.u32 2147483647, %v646
        %vm657 = vcmp.eq.f32.partialorder %v656, 8.507059e+37
        %v658 = vand.u32 %v646, 2147483648
        %v659 = vor.u32 1.1754944e-38, %v658
        %v660 = vsel %vm657, %v659, %v655
        %v661 = vmul.f32 1.0, %v660
        %v662 = vadd.f32 %v524, %v620
        %v663 = vxor.u32 %v662, 2147483648
        %v664 = vmul.f32 %v663, 1.442695
        %v665 = vpow.pop %v664
        %v666 = vadd.f32 %v665, 1.0
        %v667 = vrcp.pop %v666
        %v668 = vmul.f32 %v666, %v667
        %v669 = vsub.f32 1.0, %v668
        %v670 = vmul.f32 %v667, %v669
        %v671 = vadd.f32 %v667, %v670
        %vm672 = vweird.f32 %v666
        %vm673 = vweird.f32 %v667
        %vm674 = vmor %vm672, %vm673
        %v675 = vsel %vm674, %v667, %v671
        %v676 = vand.u32 2147483647, %v666
        %vm677 = vcmp.eq.f32.partialorder %v676, 8.507059e+37
        %v678 = vand.u32 %v666, 2147483648
        %v679 = vor.u32 1.1754944e-38, %v678
        %v680 = vsel %vm677, %v679, %v675
        %v681 = vmul.f32 1.0, %v680
        %v682 = vmul.f32 %v661, %v640
        %v683 = vadd.f32 %v525, %v682
        %v684 = vtanh.pop %v683
        %v685 = vsub.f32 1.0, %v681
        %v686 = vmul.f32 %v685, %v684
        %v687 = vmul.f32 %v681, 0.0
        %v688 = vadd.f32 %v686, %v687
        %s689 = scalar_select %p515, 1, 6
        %s690 = smul.u32 %s689, 8
        %s691 = sshra.s32 %s690, 3
        %s692 = sand.u32 %s690, 7
        %s693 = smul.u32 %s691, 3
        %s694 = smul.addr %s693, 8
        %s695 = scalar_lea.vmem [#allocation2], %s694
        %v696 = vld [vmem:[%s695] sm:$0xff]
        %v697 = vld [vmem:[%s695 + $0x8] sm:$0xff]
        %v698 = vld [vmem:[%s695 + $0x10] sm:$0xff]
        %699 = vmatpush.msra.mxu0 %v571
        %700 = vmatpush.msra.mxu0 %v568
        %701 = vmatpush.msra.mxu0 %v565
        %702 = vmatpush.msra.mxu0 %v562
        %703 = vmatpush.msra.mxu0 %v559
        %704 = vmatpush.msra.mxu0 %v556
        %705 = vmatpush.msra.mxu0 %v553
        %706 = vmatpush.msra.mxu0 %v550
        %707 = vmatpush.msra.mxu0 %v547
        %708 = vmatpush.msra.mxu0 %v544
        %709 = vmatpush.msra.mxu0 %v541
        %710 = vmatpush.msra.mxu0 %v538
        %711 = vmatpush.msra.mxu0 %v535
        %712 = vmatpush.msra.mxu0 %v532
        %713 = vmatpush.msra.mxu0 %v529
        %714 = vmatpush.msra.mxu0 %v526
        %715 = vmatmul.f32.gmra.mxu0 %v688
        %v716 = vpop.f32.mrf.mxu0
        %v717 = vadd.f32 %v576, %v716
        %718 = vdwg.mxu0
        %719 = vmatpush.msra.mxu0 %v572
        %720 = vmatpush.msra.mxu0 %v569
        %721 = vmatpush.msra.mxu0 %v566
        %722 = vmatpush.msra.mxu0 %v563
        %723 = vmatpush.msra.mxu0 %v560
        %724 = vmatpush.msra.mxu0 %v557
        %725 = vmatpush.msra.mxu0 %v554
        %726 = vmatpush.msra.mxu0 %v551
        %727 = vmatpush.msra.mxu0 %v548
        %728 = vmatpush.msra.mxu0 %v545
        %729 = vmatpush.msra.mxu0 %v542
        %730 = vmatpush.msra.mxu0 %v539
        %731 = vmatpush.msra.mxu0 %v536
        %732 = vmatpush.msra.mxu0 %v533
        %733 = vmatpush.msra.mxu0 %v530
        %734 = vmatpush.msra.mxu0 %v527
        %735 = vmatmul.f32.gmra.mxu0 %v688
        %v736 = vpop.f32.mrf.mxu0
        %v737 = vadd.f32 %v577, %v736
        %738 = vdwg.mxu0
        %739 = vmatpush.msra.mxu0 %v573
        %740 = vmatpush.msra.mxu0 %v570
        %741 = vmatpush.msra.mxu0 %v567
        %742 = vmatpush.msra.mxu0 %v564
        %743 = vmatpush.msra.mxu0 %v561
        %744 = vmatpush.msra.mxu0 %v558
        %745 = vmatpush.msra.mxu0 %v555
        %746 = vmatpush.msra.mxu0 %v552
        %747 = vmatpush.msra.mxu0 %v549
        %748 = vmatpush.msra.mxu0 %v546
        %749 = vmatpush.msra.mxu0 %v543
        %750 = vmatpush.msra.mxu0 %v540
        %751 = vmatpush.msra.mxu0 %v537
        %752 = vmatpush.msra.mxu0 %v534
        %753 = vmatpush.msra.mxu0 %v531
        %754 = vmatpush.msra.mxu0 %v528
        %755 = vmatmul.f32.gmra.mxu0 %v688
        %v756 = vpop.f32.mrf.mxu0
        %v757 = vadd.f32 %v578, %v756
        %758 = vdwg.mxu0
        %v759 = vadd.f32 %v696, %v717
        %v760 = vxor.u32 %v759, 2147483648
        %v761 = vmul.f32 %v760, 1.442695
        %v762 = vpow.pop %v761
        %v763 = vadd.f32 %v762, 1.0
        %v764 = vrcp.pop %v763
        %v765 = vmul.f32 %v763, %v764
        %v766 = vsub.f32 1.0, %v765
        %v767 = vmul.f32 %v764, %v766
        %v768 = vadd.f32 %v764, %v767
        %vm769 = vweird.f32 %v763
        %vm770 = vweird.f32 %v764
        %vm771 = vmor %vm769, %vm770
        %v772 = vsel %vm771, %v764, %v768
        %v773 = vand.u32 2147483647, %v763
        %vm774 = vcmp.eq.f32.partialorder %v773, 8.507059e+37
        %v775 = vand.u32 %v763, 2147483648
        %v776 = vor.u32 1.1754944e-38, %v775
        %v777 = vsel %vm774, %v776, %v772
        %v778 = vmul.f32 1.0, %v777
        %v779 = vadd.f32 %v697, %v737
        %v780 = vxor.u32 %v779, 2147483648
        %v781 = vmul.f32 %v780, 1.442695
        %v782 = vpow.pop %v781
        %v783 = vadd.f32 %v782, 1.0
        %v784 = vrcp.pop %v783
        %v785 = vmul.f32 %v783, %v784
        %v786 = vsub.f32 1.0, %v785
        %v787 = vmul.f32 %v784, %v786
        %v788 = vadd.f32 %v784, %v787
        %vm789 = vweird.f32 %v783
        %vm790 = vweird.f32 %v784
        %vm791 = vmor %vm789, %vm790
        %v792 = vsel %vm791, %v784, %v788
        %v793 = vand.u32 2147483647, %v783
        %vm794 = vcmp.eq.f32.partialorder %v793, 8.507059e+37
        %v795 = vand.u32 %v783, 2147483648
        %v796 = vor.u32 1.1754944e-38, %v795
        %v797 = vsel %vm794, %v796, %v792
        %v798 = vmul.f32 1.0, %v797
        %v799 = vmul.f32 %v778, %v757
        %v800 = vadd.f32 %v698, %v799
        %v801 = vtanh.pop %v800
        %v802 = vsub.f32 1.0, %v798
        %v803 = vmul.f32 %v802, %v801
        %v804 = vmul.f32 %v798, %v688
        %v805 = vadd.f32 %v803, %v804
        %s806 = scalar_select %p515, 2, 5
        %s807 = smul.u32 %s806, 8
        %s808 = sshra.s32 %s807, 3
        %s809 = sand.u32 %s807, 7
        %s810 = smul.u32 %s808, 3
        %s811 = smul.addr %s810, 8
        %s812 = scalar_lea.vmem [#allocation2], %s811
        %v813 = vld [vmem:[%s812] sm:$0xff]
        %v814 = vld [vmem:[%s812 + $0x8] sm:$0xff]
        %v815 = vld [vmem:[%s812 + $0x10] sm:$0xff]
        %816 = vmatpush.msra.mxu0 %v571
        %817 = vmatpush.msra.mxu0 %v568
        %818 = vmatpush.msra.mxu0 %v565
        %819 = vmatpush.msra.mxu0 %v562
        %820 = vmatpush.msra.mxu0 %v559
        %821 = vmatpush.msra.mxu0 %v556
        %822 = vmatpush.msra.mxu0 %v553
        %823 = vmatpush.msra.mxu0 %v550
        %824 = vmatpush.msra.mxu0 %v547
        %825 = vmatpush.msra.mxu0 %v544
        %826 = vmatpush.msra.mxu0 %v541
        %827 = vmatpush.msra.mxu0 %v538
        %828 = vmatpush.msra.mxu0 %v535
        %829 = vmatpush.msra.mxu0 %v532
        %830 = vmatpush.msra.mxu0 %v529
        %831 = vmatpush.msra.mxu0 %v526
        %832 = vmatmul.f32.gmra.mxu0 %v805
        %v833 = vpop.f32.mrf.mxu0
        %v834 = vadd.f32 %v576, %v833
        %835 = vdwg.mxu0
        %836 = vmatpush.msra.mxu0 %v572
        %837 = vmatpush.msra.mxu0 %v569
        %838 = vmatpush.msra.mxu0 %v566
        %839 = vmatpush.msra.mxu0 %v563
        %840 = vmatpush.msra.mxu0 %v560
        %841 = vmatpush.msra.mxu0 %v557
        %842 = vmatpush.msra.mxu0 %v554
        %843 = vmatpush.msra.mxu0 %v551
        %844 = vmatpush.msra.mxu0 %v548
        %845 = vmatpush.msra.mxu0 %v545
        %846 = vmatpush.msra.mxu0 %v542
        %847 = vmatpush.msra.mxu0 %v539
        %848 = vmatpush.msra.mxu0 %v536
        %849 = vmatpush.msra.mxu0 %v533
        %850 = vmatpush.msra.mxu0 %v530
        %851 = vmatpush.msra.mxu0 %v527
        %852 = vmatmul.f32.gmra.mxu0 %v805
        %v853 = vpop.f32.mrf.mxu0
        %v854 = vadd.f32 %v577, %v853
        %855 = vdwg.mxu0
        %856 = vmatpush.msra.mxu0 %v573
        %857 = vmatpush.msra.mxu0 %v570
        %858 = vmatpush.msra.mxu0 %v567
        %859 = vmatpush.msra.mxu0 %v564
        %860 = vmatpush.msra.mxu0 %v561
        %861 = vmatpush.msra.mxu0 %v558
        %862 = vmatpush.msra.mxu0 %v555
        %863 = vmatpush.msra.mxu0 %v552
        %864 = vmatpush.msra.mxu0 %v549
        %865 = vmatpush.msra.mxu0 %v546
        %866 = vmatpush.msra.mxu0 %v543
        %867 = vmatpush.msra.mxu0 %v540
        %868 = vmatpush.msra.mxu0 %v537
        %869 = vmatpush.msra.mxu0 %v534
        %870 = vmatpush.msra.mxu0 %v531
        %871 = vmatpush.msra.mxu0 %v528
        %872 = vmatmul.f32.gmra.mxu0 %v805
        %v873 = vpop.f32.mrf.mxu0
        %v874 = vadd.f32 %v578, %v873
        %875 = vdwg.mxu0
        %v876 = vadd.f32 %v813, %v834
        %v877 = vxor.u32 %v876, 2147483648
        %v878 = vmul.f32 %v877, 1.442695
        %v879 = vpow.pop %v878
        %v880 = vadd.f32 %v879, 1.0
        %v881 = vrcp.pop %v880
        %v882 = vmul.f32 %v880, %v881
        %v883 = vsub.f32 1.0, %v882
        %v884 = vmul.f32 %v881, %v883
        %v885 = vadd.f32 %v881, %v884
        %vm886 = vweird.f32 %v880
        %vm887 = vweird.f32 %v881
        %vm888 = vmor %vm886, %vm887
        %v889 = vsel %vm888, %v881, %v885
        %v890 = vand.u32 2147483647, %v880
        %vm891 = vcmp.eq.f32.partialorder %v890, 8.507059e+37
        %v892 = vand.u32 %v880, 2147483648
        %v893 = vor.u32 1.1754944e-38, %v892
        %v894 = vsel %vm891, %v893, %v889
        %v895 = vmul.f32 1.0, %v894
        %v896 = vadd.f32 %v814, %v854
        %v897 = vxor.u32 %v896, 2147483648
        %v898 = vmul.f32 %v897, 1.442695
        %v899 = vpow.pop %v898
        %v900 = vadd.f32 %v899, 1.0
        %v901 = vrcp.pop %v900
        %v902 = vmul.f32 %v900, %v901
        %v903 = vsub.f32 1.0, %v902
        %v904 = vmul.f32 %v901, %v903
        %v905 = vadd.f32 %v901, %v904
        %vm906 = vweird.f32 %v900
        %vm907 = vweird.f32 %v901
        %vm908 = vmor %vm906, %vm907
        %v909 = vsel %vm908, %v901, %v905
        %v910 = vand.u32 2147483647, %v900
        %vm911 = vcmp.eq.f32.partialorder %v910, 8.507059e+37
        %v912 = vand.u32 %v900, 2147483648
        %v913 = vor.u32 1.1754944e-38, %v912
        %v914 = vsel %vm911, %v913, %v909
        %v915 = vmul.f32 1.0, %v914
        %v916 = vmul.f32 %v895, %v874
        %v917 = vadd.f32 %v815, %v916
        %v918 = vtanh.pop %v917
        %v919 = vsub.f32 1.0, %v915
        %v920 = vmul.f32 %v919, %v918
        %v921 = vmul.f32 %v915, %v805
        %v922 = vadd.f32 %v920, %v921
        %s923 = scalar_select %p515, 3, 4
        %s924 = smul.u32 %s923, 8
        %s925 = sshra.s32 %s924, 3
        %s926 = sand.u32 %s924, 7
        %s927 = smul.u32 %s925, 3
        %s928 = smul.addr %s927, 8
        %s929 = scalar_lea.vmem [#allocation2], %s928
        %v930 = vld [vmem:[%s929] sm:$0xff]
        %v931 = vld [vmem:[%s929 + $0x8] sm:$0xff]
        %v932 = vld [vmem:[%s929 + $0x10] sm:$0xff]
        %933 = vmatpush.msra.mxu0 %v571
        %934 = vmatpush.msra.mxu0 %v568
        %935 = vmatpush.msra.mxu0 %v565
        %936 = vmatpush.msra.mxu0 %v562
        %937 = vmatpush.msra.mxu0 %v559
        %938 = vmatpush.msra.mxu0 %v556
        %939 = vmatpush.msra.mxu0 %v553
        %940 = vmatpush.msra.mxu0 %v550
        %941 = vmatpush.msra.mxu0 %v547
        %942 = vmatpush.msra.mxu0 %v544
        %943 = vmatpush.msra.mxu0 %v541
        %944 = vmatpush.msra.mxu0 %v538
        %945 = vmatpush.msra.mxu0 %v535
        %946 = vmatpush.msra.mxu0 %v532
        %947 = vmatpush.msra.mxu0 %v529
        %948 = vmatpush.msra.mxu0 %v526
        %949 = vmatmul.f32.gmra.mxu0 %v922
        %v950 = vpop.f32.mrf.mxu0
        %v951 = vadd.f32 %v576, %v950
        %952 = vdwg.mxu0
        %953 = vmatpush.msra.mxu0 %v572
        %954 = vmatpush.msra.mxu0 %v569
        %955 = vmatpush.msra.mxu0 %v566
        %956 = vmatpush.msra.mxu0 %v563
        %957 = vmatpush.msra.mxu0 %v560
        %958 = vmatpush.msra.mxu0 %v557
        %959 = vmatpush.msra.mxu0 %v554
        %960 = vmatpush.msra.mxu0 %v551
        %961 = vmatpush.msra.mxu0 %v548
        %962 = vmatpush.msra.mxu0 %v545
        %963 = vmatpush.msra.mxu0 %v542
        %964 = vmatpush.msra.mxu0 %v539
        %965 = vmatpush.msra.mxu0 %v536
        %966 = vmatpush.msra.mxu0 %v533
        %967 = vmatpush.msra.mxu0 %v530
        %968 = vmatpush.msra.mxu0 %v527
        %969 = vmatmul.f32.gmra.mxu0 %v922
        %v970 = vpop.f32.mrf.mxu0
        %v971 = vadd.f32 %v577, %v970
        %972 = vdwg.mxu0
        %973 = vmatpush.msra.mxu0 %v573
        %974 = vmatpush.msra.mxu0 %v570
        %975 = vmatpush.msra.mxu0 %v567
        %976 = vmatpush.msra.mxu0 %v564
        %977 = vmatpush.msra.mxu0 %v561
        %978 = vmatpush.msra.mxu0 %v558
        %979 = vmatpush.msra.mxu0 %v555
        %980 = vmatpush.msra.mxu0 %v552
        %981 = vmatpush.msra.mxu0 %v549
        %982 = vmatpush.msra.mxu0 %v546
        %983 = vmatpush.msra.mxu0 %v543
        %984 = vmatpush.msra.mxu0 %v540
        %985 = vmatpush.msra.mxu0 %v537
        %986 = vmatpush.msra.mxu0 %v534
        %987 = vmatpush.msra.mxu0 %v531
        %988 = vmatpush.msra.mxu0 %v528
        %989 = vmatmul.f32.gmra.mxu0 %v922
        %v990 = vpop.f32.mrf.mxu0
        %v991 = vadd.f32 %v578, %v990
        %992 = vdwg.mxu0
        %v993 = vadd.f32 %v930, %v951
        %v994 = vxor.u32 %v993, 2147483648
        %v995 = vmul.f32 %v994, 1.442695
        %v996 = vpow.pop %v995
        %v997 = vadd.f32 %v996, 1.0
        %v998 = vrcp.pop %v997
        %v999 = vmul.f32 %v997, %v998
        %v1000 = vsub.f32 1.0, %v999
        %v1001 = vmul.f32 %v998, %v1000
        %v1002 = vadd.f32 %v998, %v1001
        %vm1003 = vweird.f32 %v997
        %vm1004 = vweird.f32 %v998
        %vm1005 = vmor %vm1003, %vm1004
        %v1006 = vsel %vm1005, %v998, %v1002
        %v1007 = vand.u32 2147483647, %v997
        %vm1008 = vcmp.eq.f32.partialorder %v1007, 8.507059e+37
        %v1009 = vand.u32 %v997, 2147483648
        %v1010 = vor.u32 1.1754944e-38, %v1009
        %v1011 = vsel %vm1008, %v1010, %v1006
        %v1012 = vmul.f32 1.0, %v1011
        %v1013 = vadd.f32 %v931, %v971
        %v1014 = vxor.u32 %v1013, 2147483648
        %v1015 = vmul.f32 %v1014, 1.442695
        %v1016 = vpow.pop %v1015
        %v1017 = vadd.f32 %v1016, 1.0
        %v1018 = vrcp.pop %v1017
        %v1019 = vmul.f32 %v1017, %v1018
        %v1020 = vsub.f32 1.0, %v1019
        %v1021 = vmul.f32 %v1018, %v1020
        %v1022 = vadd.f32 %v1018, %v1021
        %vm1023 = vweird.f32 %v1017
        %vm1024 = vweird.f32 %v1018
        %vm1025 = vmor %vm1023, %vm1024
        %v1026 = vsel %vm1025, %v1018, %v1022
        %v1027 = vand.u32 2147483647, %v1017
        %vm1028 = vcmp.eq.f32.partialorder %v1027, 8.507059e+37
        %v1029 = vand.u32 %v1017, 2147483648
        %v1030 = vor.u32 1.1754944e-38, %v1029
        %v1031 = vsel %vm1028, %v1030, %v1026
        %v1032 = vmul.f32 1.0, %v1031
        %v1033 = vmul.f32 %v1012, %v991
        %v1034 = vadd.f32 %v932, %v1033
        %v1035 = vtanh.pop %v1034
        %v1036 = vsub.f32 1.0, %v1032
        %v1037 = vmul.f32 %v1036, %v1035
        %v1038 = vmul.f32 %v1032, %v922
        %v1039 = vadd.f32 %v1037, %v1038
        %s1040 = scalar_select %p515, 4, 3
        %s1041 = smul.u32 %s1040, 8
        %s1042 = sshra.s32 %s1041, 3
        %s1043 = sand.u32 %s1041, 7
        %s1044 = smul.u32 %s1042, 3
        %s1045 = smul.addr %s1044, 8
        %s1046 = scalar_lea.vmem [#allocation2], %s1045
        %v1047 = vld [vmem:[%s1046] sm:$0xff]
        %v1048 = vld [vmem:[%s1046 + $0x8] sm:$0xff]
        %v1049 = vld [vmem:[%s1046 + $0x10] sm:$0xff]
        %1050 = vmatpush.msra.mxu0 %v571
        %1051 = vmatpush.msra.mxu0 %v568
        %1052 = vmatpush.msra.mxu0 %v565
        %1053 = vmatpush.msra.mxu0 %v562
        %1054 = vmatpush.msra.mxu0 %v559
        %1055 = vmatpush.msra.mxu0 %v556
        %1056 = vmatpush.msra.mxu0 %v553
        %1057 = vmatpush.msra.mxu0 %v550
        %1058 = vmatpush.msra.mxu0 %v547
        %1059 = vmatpush.msra.mxu0 %v544
        %1060 = vmatpush.msra.mxu0 %v541
        %1061 = vmatpush.msra.mxu0 %v538
        %1062 = vmatpush.msra.mxu0 %v535
        %1063 = vmatpush.msra.mxu0 %v532
        %1064 = vmatpush.msra.mxu0 %v529
        %1065 = vmatpush.msra.mxu0 %v526
        %1066 = vmatmul.f32.gmra.mxu0 %v1039
        %v1067 = vpop.f32.mrf.mxu0
        %v1068 = vadd.f32 %v576, %v1067
        %1069 = vdwg.mxu0
        %1070 = vmatpush.msra.mxu0 %v572
        %1071 = vmatpush.msra.mxu0 %v569
        %1072 = vmatpush.msra.mxu0 %v566
        %1073 = vmatpush.msra.mxu0 %v563
        %1074 = vmatpush.msra.mxu0 %v560
        %1075 = vmatpush.msra.mxu0 %v557
        %1076 = vmatpush.msra.mxu0 %v554
        %1077 = vmatpush.msra.mxu0 %v551
        %1078 = vmatpush.msra.mxu0 %v548
        %1079 = vmatpush.msra.mxu0 %v545
        %1080 = vmatpush.msra.mxu0 %v542
        %1081 = vmatpush.msra.mxu0 %v539
        %1082 = vmatpush.msra.mxu0 %v536
        %1083 = vmatpush.msra.mxu0 %v533
        %1084 = vmatpush.msra.mxu0 %v530
        %1085 = vmatpush.msra.mxu0 %v527
        %1086 = vmatmul.f32.gmra.mxu0 %v1039
        %v1087 = vpop.f32.mrf.mxu0
        %v1088 = vadd.f32 %v577, %v1087
        %1089 = vdwg.mxu0
        %1090 = vmatpush.msra.mxu0 %v573
        %1091 = vmatpush.msra.mxu0 %v570
        %1092 = vmatpush.msra.mxu0 %v567
        %1093 = vmatpush.msra.mxu0 %v564
        %1094 = vmatpush.msra.mxu0 %v561
        %1095 = vmatpush.msra.mxu0 %v558
        %1096 = vmatpush.msra.mxu0 %v555
        %1097 = vmatpush.msra.mxu0 %v552
        %1098 = vmatpush.msra.mxu0 %v549
        %1099 = vmatpush.msra.mxu0 %v546
        %1100 = vmatpush.msra.mxu0 %v543
        %1101 = vmatpush.msra.mxu0 %v540
        %1102 = vmatpush.msra.mxu0 %v537
        %1103 = vmatpush.msra.mxu0 %v534
        %1104 = vmatpush.msra.mxu0 %v531
        %1105 = vmatpush.msra.mxu0 %v528
        %1106 = vmatmul.f32.gmra.mxu0 %v1039
        %v1107 = vpop.f32.mrf.mxu0
        %v1108 = vadd.f32 %v578, %v1107
        %1109 = vdwg.mxu0
        %v1110 = vadd.f32 %v1047, %v1068
        %v1111 = vxor.u32 %v1110, 2147483648
        %v1112 = vmul.f32 %v1111, 1.442695
        %v1113 = vpow.pop %v1112
        %v1114 = vadd.f32 %v1113, 1.0
        %v1115 = vrcp.pop %v1114
        %v1116 = vmul.f32 %v1114, %v1115
        %v1117 = vsub.f32 1.0, %v1116
        %v1118 = vmul.f32 %v1115, %v1117
        %v1119 = vadd.f32 %v1115, %v1118
        %vm1120 = vweird.f32 %v1114
        %vm1121 = vweird.f32 %v1115
        %vm1122 = vmor %vm1120, %vm1121
        %v1123 = vsel %vm1122, %v1115, %v1119
        %v1124 = vand.u32 2147483647, %v1114
        %vm1125 = vcmp.eq.f32.partialorder %v1124, 8.507059e+37
        %v1126 = vand.u32 %v1114, 2147483648
        %v1127 = vor.u32 1.1754944e-38, %v1126
        %v1128 = vsel %vm1125, %v1127, %v1123
        %v1129 = vmul.f32 1.0, %v1128
        %v1130 = vadd.f32 %v1048, %v1088
        %v1131 = vxor.u32 %v1130, 2147483648
        %v1132 = vmul.f32 %v1131, 1.442695
        %v1133 = vpow.pop %v1132
        %v1134 = vadd.f32 %v1133, 1.0
        %v1135 = vrcp.pop %v1134
        %v1136 = vmul.f32 %v1134, %v1135
        %v1137 = vsub.f32 1.0, %v1136
        %v1138 = vmul.f32 %v1135, %v1137
        %v1139 = vadd.f32 %v1135, %v1138
        %vm1140 = vweird.f32 %v1134
        %vm1141 = vweird.f32 %v1135
        %vm1142 = vmor %vm1140, %vm1141
        %v1143 = vsel %vm1142, %v1135, %v1139
        %v1144 = vand.u32 2147483647, %v1134
        %vm1145 = vcmp.eq.f32.partialorder %v1144, 8.507059e+37
        %v1146 = vand.u32 %v1134, 2147483648
        %v1147 = vor.u32 1.1754944e-38, %v1146
        %v1148 = vsel %vm1145, %v1147, %v1143
        %v1149 = vmul.f32 1.0, %v1148
        %v1150 = vmul.f32 %v1129, %v1108
        %v1151 = vadd.f32 %v1049, %v1150
        %v1152 = vtanh.pop %v1151
        %v1153 = vsub.f32 1.0, %v1149
        %v1154 = vmul.f32 %v1153, %v1152
        %v1155 = vmul.f32 %v1149, %v1039
        %v1156 = vadd.f32 %v1154, %v1155
        %s1157 = scalar_select %p515, 5, 2
        %s1158 = smul.u32 %s1157, 8
        %s1159 = sshra.s32 %s1158, 3
        %s1160 = sand.u32 %s1158, 7
        %s1161 = smul.u32 %s1159, 3
        %s1162 = smul.addr %s1161, 8
        %s1163 = scalar_lea.vmem [#allocation2], %s1162
        %v1164 = vld [vmem:[%s1163] sm:$0xff]
        %v1165 = vld [vmem:[%s1163 + $0x8] sm:$0xff]
        %v1166 = vld [vmem:[%s1163 + $0x10] sm:$0xff]
        %1167 = vmatpush.msra.mxu0 %v571
        %1168 = vmatpush.msra.mxu0 %v568
        %1169 = vmatpush.msra.mxu0 %v565
        %1170 = vmatpush.msra.mxu0 %v562
        %1171 = vmatpush.msra.mxu0 %v559
        %1172 = vmatpush.msra.mxu0 %v556
        %1173 = vmatpush.msra.mxu0 %v553
        %1174 = vmatpush.msra.mxu0 %v550
        %1175 = vmatpush.msra.mxu0 %v547
        %1176 = vmatpush.msra.mxu0 %v544
        %1177 = vmatpush.msra.mxu0 %v541
        %1178 = vmatpush.msra.mxu0 %v538
        %1179 = vmatpush.msra.mxu0 %v535
        %1180 = vmatpush.msra.mxu0 %v532
        %1181 = vmatpush.msra.mxu0 %v529
        %1182 = vmatpush.msra.mxu0 %v526
        %1183 = vmatmul.f32.gmra.mxu0 %v1156
        %v1184 = vpop.f32.mrf.mxu0
        %v1185 = vadd.f32 %v576, %v1184
        %1186 = vdwg.mxu0
        %1187 = vmatpush.msra.mxu0 %v572
        %1188 = vmatpush.msra.mxu0 %v569
        %1189 = vmatpush.msra.mxu0 %v566
        %1190 = vmatpush.msra.mxu0 %v563
        %1191 = vmatpush.msra.mxu0 %v560
        %1192 = vmatpush.msra.mxu0 %v557
        %1193 = vmatpush.msra.mxu0 %v554
        %1194 = vmatpush.msra.mxu0 %v551
        %1195 = vmatpush.msra.mxu0 %v548
        %1196 = vmatpush.msra.mxu0 %v545
        %1197 = vmatpush.msra.mxu0 %v542
        %1198 = vmatpush.msra.mxu0 %v539
        %1199 = vmatpush.msra.mxu0 %v536
        %1200 = vmatpush.msra.mxu0 %v533
        %1201 = vmatpush.msra.mxu0 %v530
        %1202 = vmatpush.msra.mxu0 %v527
        %1203 = vmatmul.f32.gmra.mxu0 %v1156
        %v1204 = vpop.f32.mrf.mxu0
        %v1205 = vadd.f32 %v577, %v1204
        %1206 = vdwg.mxu0
        %1207 = vmatpush.msra.mxu0 %v573
        %1208 = vmatpush.msra.mxu0 %v570
        %1209 = vmatpush.msra.mxu0 %v567
        %1210 = vmatpush.msra.mxu0 %v564
        %1211 = vmatpush.msra.mxu0 %v561
        %1212 = vmatpush.msra.mxu0 %v558
        %1213 = vmatpush.msra.mxu0 %v555
        %1214 = vmatpush.msra.mxu0 %v552
        %1215 = vmatpush.msra.mxu0 %v549
        %1216 = vmatpush.msra.mxu0 %v546
        %1217 = vmatpush.msra.mxu0 %v543
        %1218 = vmatpush.msra.mxu0 %v540
        %1219 = vmatpush.msra.mxu0 %v537
        %1220 = vmatpush.msra.mxu0 %v534
        %1221 = vmatpush.msra.mxu0 %v531
        %1222 = vmatpush.msra.mxu0 %v528
        %1223 = vmatmul.f32.gmra.mxu0 %v1156
        %v1224 = vpop.f32.mrf.mxu0
        %v1225 = vadd.f32 %v578, %v1224
        %1226 = vdwg.mxu0
        %v1227 = vadd.f32 %v1164, %v1185
        %v1228 = vxor.u32 %v1227, 2147483648
        %v1229 = vmul.f32 %v1228, 1.442695
        %v1230 = vpow.pop %v1229
        %v1231 = vadd.f32 %v1230, 1.0
        %v1232 = vrcp.pop %v1231
        %v1233 = vmul.f32 %v1231, %v1232
        %v1234 = vsub.f32 1.0, %v1233
        %v1235 = vmul.f32 %v1232, %v1234
        %v1236 = vadd.f32 %v1232, %v1235
        %vm1237 = vweird.f32 %v1231
        %vm1238 = vweird.f32 %v1232
        %vm1239 = vmor %vm1237, %vm1238
        %v1240 = vsel %vm1239, %v1232, %v1236
        %v1241 = vand.u32 2147483647, %v1231
        %vm1242 = vcmp.eq.f32.partialorder %v1241, 8.507059e+37
        %v1243 = vand.u32 %v1231, 2147483648
        %v1244 = vor.u32 1.1754944e-38, %v1243
        %v1245 = vsel %vm1242, %v1244, %v1240
        %v1246 = vmul.f32 1.0, %v1245
        %v1247 = vadd.f32 %v1165, %v1205
        %v1248 = vxor.u32 %v1247, 2147483648
        %v1249 = vmul.f32 %v1248, 1.442695
        %v1250 = vpow.pop %v1249
        %v1251 = vadd.f32 %v1250, 1.0
        %v1252 = vrcp.pop %v1251
        %v1253 = vmul.f32 %v1251, %v1252
        %v1254 = vsub.f32 1.0, %v1253
        %v1255 = vmul.f32 %v1252, %v1254
        %v1256 = vadd.f32 %v1252, %v1255
        %vm1257 = vweird.f32 %v1251
        %vm1258 = vweird.f32 %v1252
        %vm1259 = vmor %vm1257, %vm1258
        %v1260 = vsel %vm1259, %v1252, %v1256
        %v1261 = vand.u32 2147483647, %v1251
        %vm1262 = vcmp.eq.f32.partialorder %v1261, 8.507059e+37
        %v1263 = vand.u32 %v1251, 2147483648
        %v1264 = vor.u32 1.1754944e-38, %v1263
        %v1265 = vsel %vm1262, %v1264, %v1260
        %v1266 = vmul.f32 1.0, %v1265
        %v1267 = vmul.f32 %v1246, %v1225
        %v1268 = vadd.f32 %v1166, %v1267
        %v1269 = vtanh.pop %v1268
        %v1270 = vsub.f32 1.0, %v1266
        %v1271 = vmul.f32 %v1270, %v1269
        %v1272 = vmul.f32 %v1266, %v1156
        %v1273 = vadd.f32 %v1271, %v1272
        %s1274 = scalar_select %p515, 6, 1
        %s1275 = smul.u32 %s1274, 8
        %s1276 = sshra.s32 %s1275, 3
        %s1277 = sand.u32 %s1275, 7
        %s1278 = smul.u32 %s1276, 3
        %s1279 = smul.addr %s1278, 8
        %s1280 = scalar_lea.vmem [#allocation2], %s1279
        %v1281 = vld [vmem:[%s1280] sm:$0xff]
        %v1282 = vld [vmem:[%s1280 + $0x8] sm:$0xff]
        %v1283 = vld [vmem:[%s1280 + $0x10] sm:$0xff]
        %1284 = vmatpush.msra.mxu0 %v571
        %1285 = vmatpush.msra.mxu0 %v568
        %1286 = vmatpush.msra.mxu0 %v565
        %1287 = vmatpush.msra.mxu0 %v562
        %1288 = vmatpush.msra.mxu0 %v559
        %1289 = vmatpush.msra.mxu0 %v556
        %1290 = vmatpush.msra.mxu0 %v553
        %1291 = vmatpush.msra.mxu0 %v550
        %1292 = vmatpush.msra.mxu0 %v547
        %1293 = vmatpush.msra.mxu0 %v544
        %1294 = vmatpush.msra.mxu0 %v541
        %1295 = vmatpush.msra.mxu0 %v538
        %1296 = vmatpush.msra.mxu0 %v535
        %1297 = vmatpush.msra.mxu0 %v532
        %1298 = vmatpush.msra.mxu0 %v529
        %1299 = vmatpush.msra.mxu0 %v526
        %1300 = vmatmul.f32.gmra.mxu0 %v1273
        %v1301 = vpop.f32.mrf.mxu0
        %v1302 = vadd.f32 %v576, %v1301
        %1303 = vdwg.mxu0
        %1304 = vmatpush.msra.mxu0 %v572
        %1305 = vmatpush.msra.mxu0 %v569
        %1306 = vmatpush.msra.mxu0 %v566
        %1307 = vmatpush.msra.mxu0 %v563
        %1308 = vmatpush.msra.mxu0 %v560
        %1309 = vmatpush.msra.mxu0 %v557
        %1310 = vmatpush.msra.mxu0 %v554
        %1311 = vmatpush.msra.mxu0 %v551
        %1312 = vmatpush.msra.mxu0 %v548
        %1313 = vmatpush.msra.mxu0 %v545
        %1314 = vmatpush.msra.mxu0 %v542
        %1315 = vmatpush.msra.mxu0 %v539
        %1316 = vmatpush.msra.mxu0 %v536
        %1317 = vmatpush.msra.mxu0 %v533
        %1318 = vmatpush.msra.mxu0 %v530
        %1319 = vmatpush.msra.mxu0 %v527
        %1320 = vmatmul.f32.gmra.mxu0 %v1273
        %v1321 = vpop.f32.mrf.mxu0
        %v1322 = vadd.f32 %v577, %v1321
        %1323 = vdwg.mxu0
        %1324 = vmatpush.msra.mxu0 %v573
        %1325 = vmatpush.msra.mxu0 %v570
        %1326 = vmatpush.msra.mxu0 %v567
        %1327 = vmatpush.msra.mxu0 %v564
        %1328 = vmatpush.msra.mxu0 %v561
        %1329 = vmatpush.msra.mxu0 %v558
        %1330 = vmatpush.msra.mxu0 %v555
        %1331 = vmatpush.msra.mxu0 %v552
        %1332 = vmatpush.msra.mxu0 %v549
        %1333 = vmatpush.msra.mxu0 %v546
        %1334 = vmatpush.msra.mxu0 %v543
        %1335 = vmatpush.msra.mxu0 %v540
        %1336 = vmatpush.msra.mxu0 %v537
        %1337 = vmatpush.msra.mxu0 %v534
        %1338 = vmatpush.msra.mxu0 %v531
        %1339 = vmatpush.msra.mxu0 %v528
        %1340 = vmatmul.f32.gmra.mxu0 %v1273
        %v1341 = vpop.f32.mrf.mxu0
        %v1342 = vadd.f32 %v578, %v1341
        %1343 = vdwg.mxu0
        %v1344 = vadd.f32 %v1281, %v1302
        %v1345 = vxor.u32 %v1344, 2147483648
        %v1346 = vmul.f32 %v1345, 1.442695
        %v1347 = vpow.pop %v1346
        %v1348 = vadd.f32 %v1347, 1.0
        %v1349 = vrcp.pop %v1348
        %v1350 = vmul.f32 %v1348, %v1349
        %v1351 = vsub.f32 1.0, %v1350
        %v1352 = vmul.f32 %v1349, %v1351
        %v1353 = vadd.f32 %v1349, %v1352
        %vm1354 = vweird.f32 %v1348
        %vm1355 = vweird.f32 %v1349
        %vm1356 = vmor %vm1354, %vm1355
        %v1357 = vsel %vm1356, %v1349, %v1353
        %v1358 = vand.u32 2147483647, %v1348
        %vm1359 = vcmp.eq.f32.partialorder %v1358, 8.507059e+37
        %v1360 = vand.u32 %v1348, 2147483648
        %v1361 = vor.u32 1.1754944e-38, %v1360
        %v1362 = vsel %vm1359, %v1361, %v1357
        %v1363 = vmul.f32 1.0, %v1362
        %v1364 = vadd.f32 %v1282, %v1322
        %v1365 = vxor.u32 %v1364, 2147483648
        %v1366 = vmul.f32 %v1365, 1.442695
        %v1367 = vpow.pop %v1366
        %v1368 = vadd.f32 %v1367, 1.0
        %v1369 = vrcp.pop %v1368
        %v1370 = vmul.f32 %v1368, %v1369
        %v1371 = vsub.f32 1.0, %v1370
        %v1372 = vmul.f32 %v1369, %v1371
        %v1373 = vadd.f32 %v1369, %v1372
        %vm1374 = vweird.f32 %v1368
        %vm1375 = vweird.f32 %v1369
        %vm1376 = vmor %vm1374, %vm1375
        %v1377 = vsel %vm1376, %v1369, %v1373
        %v1378 = vand.u32 2147483647, %v1368
        %vm1379 = vcmp.eq.f32.partialorder %v1378, 8.507059e+37
        %v1380 = vand.u32 %v1368, 2147483648
        %v1381 = vor.u32 1.1754944e-38, %v1380
        %v1382 = vsel %vm1379, %v1381, %v1377
        %v1383 = vmul.f32 1.0, %v1382
        %v1384 = vmul.f32 %v1363, %v1342
        %v1385 = vadd.f32 %v1283, %v1384
        %v1386 = vtanh.pop %v1385
        %v1387 = vsub.f32 1.0, %v1383
        %v1388 = vmul.f32 %v1387, %v1386
        %v1389 = vmul.f32 %v1383, %v1273
        %v1390 = vadd.f32 %v1388, %v1389
        %s1391 = scalar_select %p515, 7, 0
        %s1392 = smul.u32 %s1391, 8
        %s1393 = sshra.s32 %s1392, 3
        %s1394 = sand.u32 %s1392, 7
        %s1395 = smul.u32 %s1393, 3
        %s1396 = smul.addr %s1395, 8
        %s1397 = scalar_lea.vmem [#allocation2], %s1396
        %v1398 = vld [vmem:[%s1397] sm:$0xff]
        %v1399 = vld [vmem:[%s1397 + $0x8] sm:$0xff]
        %v1400 = vld [vmem:[%s1397 + $0x10] sm:$0xff]
        %1401 = vmatpush.msra.mxu0 %v571
        %1402 = vmatpush.msra.mxu0 %v568
        %1403 = vmatpush.msra.mxu0 %v565
        %1404 = vmatpush.msra.mxu0 %v562
        %1405 = vmatpush.msra.mxu0 %v559
        %1406 = vmatpush.msra.mxu0 %v556
        %1407 = vmatpush.msra.mxu0 %v553
        %1408 = vmatpush.msra.mxu0 %v550
        %1409 = vmatpush.msra.mxu0 %v547
        %1410 = vmatpush.msra.mxu0 %v544
        %1411 = vmatpush.msra.mxu0 %v541
        %1412 = vmatpush.msra.mxu0 %v538
        %1413 = vmatpush.msra.mxu0 %v535
        %1414 = vmatpush.msra.mxu0 %v532
        %1415 = vmatpush.msra.mxu0 %v529
        %1416 = vmatpush.msra.mxu0 %v526
        %1417 = vmatmul.f32.gmra.mxu0 %v1390
        %v1418 = vpop.f32.mrf.mxu0
        %v1419 = vadd.f32 %v576, %v1418
        %1420 = vdwg.mxu0
        %1421 = vmatpush.msra.mxu0 %v572
        %1422 = vmatpush.msra.mxu0 %v569
        %1423 = vmatpush.msra.mxu0 %v566
        %1424 = vmatpush.msra.mxu0 %v563
        %1425 = vmatpush.msra.mxu0 %v560
        %1426 = vmatpush.msra.mxu0 %v557
        %1427 = vmatpush.msra.mxu0 %v554
        %1428 = vmatpush.msra.mxu0 %v551
        %1429 = vmatpush.msra.mxu0 %v548
        %1430 = vmatpush.msra.mxu0 %v545
        %1431 = vmatpush.msra.mxu0 %v542
        %1432 = vmatpush.msra.mxu0 %v539
        %1433 = vmatpush.msra.mxu0 %v536
        %1434 = vmatpush.msra.mxu0 %v533
        %1435 = vmatpush.msra.mxu0 %v530
        %1436 = vmatpush.msra.mxu0 %v527
        %1437 = vmatmul.f32.gmra.mxu0 %v1390
        %v1438 = vpop.f32.mrf.mxu0
        %v1439 = vadd.f32 %v577, %v1438
        %1440 = vdwg.mxu0
        %1441 = vmatpush.msra.mxu0 %v573
        %1442 = vmatpush.msra.mxu0 %v570
        %1443 = vmatpush.msra.mxu0 %v567
        %1444 = vmatpush.msra.mxu0 %v564
        %1445 = vmatpush.msra.mxu0 %v561
        %1446 = vmatpush.msra.mxu0 %v558
        %1447 = vmatpush.msra.mxu0 %v555
        %1448 = vmatpush.msra.mxu0 %v552
        %1449 = vmatpush.msra.mxu0 %v549
        %1450 = vmatpush.msra.mxu0 %v546
        %1451 = vmatpush.msra.mxu0 %v543
        %1452 = vmatpush.msra.mxu0 %v540
        %1453 = vmatpush.msra.mxu0 %v537
        %1454 = vmatpush.msra.mxu0 %v534
        %1455 = vmatpush.msra.mxu0 %v531
        %1456 = vmatpush.msra.mxu0 %v528
        %1457 = vmatmul.f32.gmra.mxu0 %v1390
        %v1458 = vpop.f32.mrf.mxu0
        %v1459 = vadd.f32 %v578, %v1458
        %1460 = vdwg.mxu0
        %v1461 = vadd.f32 %v1398, %v1419
        %v1462 = vxor.u32 %v1461, 2147483648
        %v1463 = vmul.f32 %v1462, 1.442695
        %v1464 = vpow.pop %v1463
        %v1465 = vadd.f32 %v1464, 1.0
        %v1466 = vrcp.pop %v1465
        %v1467 = vmul.f32 %v1465, %v1466
        %v1468 = vsub.f32 1.0, %v1467
        %v1469 = vmul.f32 %v1466, %v1468
        %v1470 = vadd.f32 %v1466, %v1469
        %vm1471 = vweird.f32 %v1465
        %vm1472 = vweird.f32 %v1466
        %vm1473 = vmor %vm1471, %vm1472
        %v1474 = vsel %vm1473, %v1466, %v1470
        %v1475 = vand.u32 2147483647, %v1465
        %vm1476 = vcmp.eq.f32.partialorder %v1475, 8.507059e+37
        %v1477 = vand.u32 %v1465, 2147483648
        %v1478 = vor.u32 1.1754944e-38, %v1477
        %v1479 = vsel %vm1476, %v1478, %v1474
        %v1480 = vmul.f32 1.0, %v1479
        %v1481 = vadd.f32 %v1399, %v1439
        %v1482 = vxor.u32 %v1481, 2147483648
        %v1483 = vmul.f32 %v1482, 1.442695
        %v1484 = vpow.pop %v1483
        %v1485 = vadd.f32 %v1484, 1.0
        %v1486 = vrcp.pop %v1485
        %v1487 = vmul.f32 %v1485, %v1486
        %v1488 = vsub.f32 1.0, %v1487
        %v1489 = vmul.f32 %v1486, %v1488
        %v1490 = vadd.f32 %v1486, %v1489
        %vm1491 = vweird.f32 %v1485
        %vm1492 = vweird.f32 %v1486
        %vm1493 = vmor %vm1491, %vm1492
        %v1494 = vsel %vm1493, %v1486, %v1490
        %v1495 = vand.u32 2147483647, %v1485
        %vm1496 = vcmp.eq.f32.partialorder %v1495, 8.507059e+37
        %v1497 = vand.u32 %v1485, 2147483648
        %v1498 = vor.u32 1.1754944e-38, %v1497
        %v1499 = vsel %vm1496, %v1498, %v1494
        %v1500 = vmul.f32 1.0, %v1499
        %v1501 = vmul.f32 %v1480, %v1459
        %v1502 = vadd.f32 %v1400, %v1501
        %v1503 = vtanh.pop %v1502
        %v1504 = vsub.f32 1.0, %v1500
        %v1505 = vmul.f32 %v1504, %v1503
        %v1506 = vmul.f32 %v1500, %v1390
        %v1507 = vadd.f32 %v1505, %v1506
        %1508 = vst [vmem:[%s312] sm:$0xff] %v1507
        %s1509 = sand.u32 %s158, 1
        %s1510 = scalar_lea.sflag [#allocation5], %s1509
        %s1511 = sand.u32 %s158, 1
        %s1512 = smul.addr %s1511, 8
        %s1513 = scalar_lea.vmem [#allocation8], %s1512
        // Predicated region
        $region49: #{tpu_custom_call.1} parent=39 // pred_check
          %p1514 = pneg %p168
        $region50: #{tpu_custom_call.1} parent=39 // pred_check_branch
          %1516 = sbr.rel (%p1514) target = $region52
        $region51: #{tpu_custom_call.1} parent=39 // pred_region
          %1518 = vsyncadd %s1510, 0
          %s1519 = smul.addr %s25, 8
          %s1520 = scalar_lea.hbm %s5, %s1519
          %s1522 = sshll.u32 %s1513, 4
          %s1523 = int_to_ptr.vmem [resolvable:$true] %s1522
          %s1524 = sshll.u32 %s1520, 4
          %s1525 = int_to_ptr.hbm [resolvable:$true] %s1524
          %1527 = dma.vmem_to_hbm [thread:$0]  %s1523, 128, %s1525, %s1510
        $region52: #{tpu_custom_call.1} parent=39 // pred_fallthru
          _
      $region40: #{tpu_custom_call.1} parent=5 // pred_fallthru
        _
      %p1528 = scmp.le.s32.totalorder 2, %s20
      // Predicated region
      $region53: #{tpu_custom_call.1} parent=5 // pred_check
        %p1529 = pneg %p1528
      $region54: #{tpu_custom_call.1} parent=5 // pred_check_branch
        %1531 = sbr.rel (%p1529) target = $region56
      $region55: #{tpu_custom_call.1} parent=5 // pred_region
        %s1532 = ssub.s32 %s20, 2
        // Predicated region
        $region57: #{tpu_custom_call.1} parent=55 // pred_check
          %p1533 = pneg %p174
        $region58: #{tpu_custom_call.1} parent=55 // pred_check_branch
          %1535 = sbr.rel (%p1533) target = $region60
        $region59: #{tpu_custom_call.1} parent=55 // pred_region
          %s1536 = sand.u32 %s159, 1
          %s1537 = scalar_lea.sflag [#allocation5], %s1536
          %s1538 = sand.u32 %s159, 1
          %s1539 = smul.addr %s1538, 8
          %s1540 = scalar_lea.vmem [#allocation8], %s1539
          %1542 = dma.done %s1537, 128
        $region60: #{tpu_custom_call.1} parent=55 // pred_fallthru
          _
      $region56: #{tpu_custom_call.1} parent=5 // pred_fallthru
        _
    $region6: #{tpu_custom_call.1} parent=1 // loop_footer
      %s24 = sadd.s32 1, %s20
    $region7: #{tpu_custom_call.1} parent=1 // loop_footer_branch
      %19 = sbr.rel target = $region3
    $region8: #{tpu_custom_call.1} parent=1 // loop_exit
      _
    %1543 = vsyncpa [#allocation4], 1
    %s1544 = scalar_lea.sflag [#allocation4], 1
    %1545 = vsyncpa %s1544, 1
    %1546 = vsyncpa [#allocation7], 1
    %s1547 = scalar_lea.sflag [#allocation7], 1
    %1548 = vsyncpa %s1547, 1
    %1549 = vsyncpa [#allocation5], 1
    %s1550 = scalar_lea.sflag [#allocation5], 1
    %1551 = vsyncpa %s1550, 1

</llo_original>
